<compile_context>
chip_gen: v6e
topology: v6e:2x2x1
jax: 0.10.0
libtpu: 0.0.40
codegen_flags: <defaults>
</compile_context>

<pallas_src>
import functools

import jax
import jax.numpy as jnp
from jax import lax
from jax.experimental import pallas as pl
from jax.experimental.pallas import tpu as pltpu

LANE = 128
SUBLANE = 8


def _round_up(x, m):
    return (x + m - 1) // m * m


def mlp_embedding_kernel(ids_ref, emb_ref, w1_ref, b1_ref, w2_ref, b2_ref,
                         out_ref, *, num_class):
    ids = ids_ref[...]                               # [TB, S] int32
    TB, S = ids.shape
    Vp = emb_ref.shape[0]

    # Bag-of-words counts scaled by 1/S: one compare against a (TB, S, Vp)
    # iota, then a sublane reduce over the sequence axis.  Values are
    # multiples of 1/S <= 1, so the bf16 cast below is exact.
    vocab_iota = lax.broadcasted_iota(jnp.int32, (TB, S, Vp), 2)
    onehot = ids[:, :, None] == vocab_iota
    inv_s = jnp.float32(1.0 / S)
    counts_scaled = jnp.sum(jnp.where(onehot, inv_s, jnp.float32(0.0)),
                            axis=1)                  # [TB, Vp] f32

    # Mean embedding: (counts / S) @ E  on the MXU, bf16 in / f32 accumulate.
    emb_mean = jnp.dot(counts_scaled.astype(jnp.bfloat16), emb_ref[...],
                       preferred_element_type=jnp.float32)     # [TB, Ep]

    # Linear1 + ReLU (epilogue in f32).
    hidden = jnp.dot(emb_mean.astype(jnp.bfloat16), w1_ref[...],
                     preferred_element_type=jnp.float32) + b1_ref[...]
    hidden = jnp.maximum(hidden, 0.0)

    # Linear2.
    logits = jnp.dot(hidden.astype(jnp.bfloat16), w2_ref[...],
                     preferred_element_type=jnp.float32) + b2_ref[...]

    # Mask padded class lanes so they do not affect the log-softmax.
    Cp = logits.shape[1]
    class_iota = lax.broadcasted_iota(jnp.int32, (TB, Cp), 1)
    logits = jnp.where(class_iota < num_class, logits, jnp.float32(-1e30))

    # Stable log_softmax over the class dim.
    m = jnp.max(logits, axis=1, keepdims=True)
    shifted = logits - m
    lse = jnp.log(jnp.sum(jnp.exp(shifted), axis=1, keepdims=True))
    out_ref[...] = shifted - lse


def mlp_embedding_forward(ids, emb_table, w1, b1, w2, b2):
    B, S = ids.shape
    V, E = emb_table.shape
    H = w1.shape[1]
    C = w2.shape[1]

    # Lane-dense padding of every matmul / store dimension.
    Vp, Ep, Hp, Cp = (_round_up(d, LANE) for d in (V, E, H, C))
    Bp = _round_up(B, SUBLANE)
    if Bp > 128:
        TB = 128
        Bp = _round_up(Bp, TB)
    else:
        TB = Bp

    ids_p = jnp.zeros((Bp, S), jnp.int32).at[:B, :].set(ids.astype(jnp.int32))
    emb_p = jnp.zeros((Vp, Ep), jnp.bfloat16).at[:V, :E].set(
        emb_table.astype(jnp.bfloat16))
    w1_p = jnp.zeros((Ep, Hp), jnp.bfloat16).at[:E, :H].set(
        w1.astype(jnp.bfloat16))
    b1_p = jnp.zeros((1, Hp), jnp.float32).at[:, :H].set(
        b1.reshape(1, H).astype(jnp.float32))
    w2_p = jnp.zeros((Hp, Cp), jnp.bfloat16).at[:H, :C].set(
        w2.astype(jnp.bfloat16))
    b2_p = jnp.zeros((1, Cp), jnp.float32).at[:, :C].set(
        b2.reshape(1, C).astype(jnp.float32))

    flops = 2 * Bp * (Vp * Ep + Ep * Hp + Hp * Cp)
    transcendentals = Bp * Cp + Bp                   # exp per logit + log per row
    bytes_accessed = (ids_p.size * 4 + emb_p.size * 2 + w1_p.size * 2
                      + b1_p.size * 4 + w2_p.size * 2 + b2_p.size * 4
                      + Bp * Cp * 4)

    kernel = functools.partial(mlp_embedding_kernel, num_class=C)
    out_p = pl.pallas_call(
        kernel,
        out_shape=jax.ShapeDtypeStruct((Bp, Cp), jnp.float32),
        grid_spec=pltpu.PrefetchScalarGridSpec(
            num_scalar_prefetch=0,
            grid=(Bp // TB,),
            in_specs=[
                pl.BlockSpec((TB, S), lambda i: (i, 0)),
                pl.BlockSpec((Vp, Ep), lambda i: (0, 0)),
                pl.BlockSpec((Ep, Hp), lambda i: (0, 0)),
                pl.BlockSpec((1, Hp), lambda i: (0, 0)),
                pl.BlockSpec((Hp, Cp), lambda i: (0, 0)),
                pl.BlockSpec((1, Cp), lambda i: (0, 0)),
            ],
            out_specs=pl.BlockSpec((TB, Cp), lambda i: (i, 0)),
        ),
        compiler_params=pltpu.CompilerParams(
            dimension_semantics=("parallel",)),
        cost_estimate=pl.CostEstimate(
            flops=flops, transcendentals=transcendentals,
            bytes_accessed=bytes_accessed),
    )(ids_p, emb_p, w1_p, b1_p, w2_p, b2_p)

    return out_p[:B, :C]


def mlp_embedding_reference(ids, emb_table, w1, b1, w2, b2):
    emb = emb_table[ids]                             # [B, S, E]
    emb_mean = emb.mean(axis=1)                      # [B, E]
    hidden = jnp.maximum(emb_mean @ w1 + b1, 0.0)
    logits = hidden @ w2 + b2
    return jax.nn.log_softmax(logits, axis=1)


if __name__ == "__main__":
    # Small shapes consistent with the module; batch kept largish so the call
    # amortizes the fixed ~0.35 us pallas_call overhead.
    B, S = 64, 8                  # batch, sequence length
    V, E, H, C = 32, 32, 32, 16   # vocab_size, embedding_dim, hidden_dim, num_class

    key = jax.random.PRNGKey(0)
    k_ids, k_emb, k_w1, k_b1, k_w2, k_b2 = jax.random.split(key, 6)

    ids = jax.random.randint(k_ids, (B, S), 0, V, dtype=jnp.int32)
    emb_table = jax.random.normal(k_emb, (V, E), dtype=jnp.float32) * 0.1
    w1 = jax.random.normal(k_w1, (E, H), dtype=jnp.float32) * 0.1
    b1 = jax.random.normal(k_b1, (1, H), dtype=jnp.float32) * 0.1
    w2 = jax.random.normal(k_w2, (H, C), dtype=jnp.float32) * 0.1
    b2 = jax.random.normal(k_b2, (1, C), dtype=jnp.float32) * 0.1

    out = mlp_embedding_forward(ids, emb_table, w1, b1, w2, b2)
    out = jax.block_until_ready(out)

    ref = mlp_embedding_reference(ids, emb_table, w1, b1, w2, b2)
    assert out.shape == (B, C)
    # bf16 matmul operands -> loosened tolerance vs the f32 reference.
    assert jnp.allclose(out, ref, atol=2e-2, rtol=2e-2), (
        float(jnp.max(jnp.abs(out - ref))))

    print("KERNEL_OK")
</pallas_src>

<mosaic_0001>
module attributes {stable_mosaic.version = 11 : i64} {
  func.func @mlp_embedding_kernel(%arg0: i32, %arg1: memref<64x8xi32, #tpu.memory_space<vmem>>, %arg2: memref<128x128xbf16, #tpu.memory_space<vmem>>, %arg3: memref<128x128xbf16, #tpu.memory_space<vmem>>, %arg4: memref<1x128xf32, #tpu.memory_space<vmem>>, %arg5: memref<128x128xbf16, #tpu.memory_space<vmem>>, %arg6: memref<1x128xf32, #tpu.memory_space<vmem>>, %arg7: memref<64x128xf32, #tpu.memory_space<vmem>>) attributes {dimension_semantics = [#tpu.dimension_semantics<parallel>], iteration_bounds = array<i64: 1>, scalar_prefetch = 0 : i64, scratch_operands = 0 : i64, tpu.core_type = #tpu.core_type<tc>, window_params = [{transform_indices = @transform_0, window_bounds = array<i64: 64, 8>}, {pipeline_mode = #tpu.pipeline_mode<synchronous>, transform_indices = @transform_1, window_bounds = array<i64: 128, 128>}, {pipeline_mode = #tpu.pipeline_mode<synchronous>, transform_indices = @transform_2, window_bounds = array<i64: 128, 128>}, {pipeline_mode = #tpu.pipeline_mode<synchronous>, transform_indices = @transform_3, window_bounds = array<i64: 1, 128>}, {pipeline_mode = #tpu.pipeline_mode<synchronous>, transform_indices = @transform_4, window_bounds = array<i64: 128, 128>}, {pipeline_mode = #tpu.pipeline_mode<synchronous>, transform_indices = @transform_5, window_bounds = array<i64: 1, 128>}, {transform_indices = @transform_6, window_bounds = array<i64: 64, 128>}]} {
    %c0 = arith.constant 0 : index
    %c0_0 = arith.constant 0 : index
    %0 = vector.load %arg1[%c0, %c0_0] : memref<64x8xi32, #tpu.memory_space<vmem>>, vector<64x8xi32>
    %1 = tpu.iota {dimensions = array<i32: 2>} : vector<64x8x128xi32>
    %2 = vector.shape_cast %0 : vector<64x8xi32> to vector<64x8x1xi32>
    %3 = vector.broadcast %2 : vector<64x8x1xi32> to vector<64x8x128xi32>
    %4 = arith.cmpi eq, %3, %1 : vector<64x8x128xi32>
    %cst = arith.constant 1.250000e-01 : f32
    %cst_1 = arith.constant 0.000000e+00 : f32
    %5 = vector.broadcast %cst : f32 to vector<64x8x128xf32>
    %6 = vector.broadcast %cst_1 : f32 to vector<64x8x128xf32>
    %7 = arith.select %4, %5, %6 : vector<64x8x128xi1>, vector<64x8x128xf32>
    %cst_2 = arith.constant dense<0.000000e+00> : vector<64x128xf32>
    %8 = vector.multi_reduction <add>, %7, %cst_2 [1] : vector<64x8x128xf32> to vector<64x128xf32>
    %9 = arith.truncf %8 : vector<64x128xf32> to vector<64x128xbf16>
    %c0_3 = arith.constant 0 : index
    %c0_4 = arith.constant 0 : index
    %10 = vector.load %arg2[%c0_3, %c0_4] : memref<128x128xbf16, #tpu.memory_space<vmem>>, vector<128x128xbf16>
    %cst_5 = arith.constant dense<0.000000e+00> : vector<64x128xf32>
    %11 = tpu.matmul %9, %10, %cst_5 {dimension_numbers = #tpu.dot_dimension_numbers<[1], [0], [0], [1], [0, 0, 1, 1], [], []>} : vector<64x128xbf16>, vector<128x128xbf16>, vector<64x128xf32> -> vector<64x128xf32>
    %12 = arith.truncf %11 : vector<64x128xf32> to vector<64x128xbf16>
    %c0_6 = arith.constant 0 : index
    %c0_7 = arith.constant 0 : index
    %13 = vector.load %arg3[%c0_6, %c0_7] : memref<128x128xbf16, #tpu.memory_space<vmem>>, vector<128x128xbf16>
    %cst_8 = arith.constant dense<0.000000e+00> : vector<64x128xf32>
    %14 = tpu.matmul %12, %13, %cst_8 {dimension_numbers = #tpu.dot_dimension_numbers<[1], [0], [0], [1], [0, 0, 1, 1], [], []>} : vector<64x128xbf16>, vector<128x128xbf16>, vector<64x128xf32> -> vector<64x128xf32>
    %c0_9 = arith.constant 0 : index
    %c0_10 = arith.constant 0 : index
    %15 = vector.load %arg4[%c0_9, %c0_10] : memref<1x128xf32, #tpu.memory_space<vmem>>, vector<1x128xf32>
    %16 = vector.broadcast %15 : vector<1x128xf32> to vector<64x128xf32>
    %17 = arith.addf %14, %16 : vector<64x128xf32>
    %cst_11 = arith.constant 0.000000e+00 : f32
    %18 = vector.broadcast %cst_11 : f32 to vector<64x128xf32>
    %19 = arith.maximumf %17, %18 : vector<64x128xf32>
    %20 = arith.truncf %19 : vector<64x128xf32> to vector<64x128xbf16>
    %c0_12 = arith.constant 0 : index
    %c0_13 = arith.constant 0 : index
    %21 = vector.load %arg5[%c0_12, %c0_13] : memref<128x128xbf16, #tpu.memory_space<vmem>>, vector<128x128xbf16>
    %cst_14 = arith.constant dense<0.000000e+00> : vector<64x128xf32>
    %22 = tpu.matmul %20, %21, %cst_14 {dimension_numbers = #tpu.dot_dimension_numbers<[1], [0], [0], [1], [0, 0, 1, 1], [], []>} : vector<64x128xbf16>, vector<128x128xbf16>, vector<64x128xf32> -> vector<64x128xf32>
    %c0_15 = arith.constant 0 : index
    %c0_16 = arith.constant 0 : index
    %23 = vector.load %arg6[%c0_15, %c0_16] : memref<1x128xf32, #tpu.memory_space<vmem>>, vector<1x128xf32>
    %24 = vector.broadcast %23 : vector<1x128xf32> to vector<64x128xf32>
    %25 = arith.addf %22, %24 : vector<64x128xf32>
    %26 = tpu.iota {dimensions = array<i32: 1>} : vector<64x128xi32>
    %c16_i32 = arith.constant 16 : i32
    %27 = vector.broadcast %c16_i32 : i32 to vector<64x128xi32>
    %28 = arith.cmpi slt, %26, %27 : vector<64x128xi32>
    %cst_17 = arith.constant -1.000000e+30 : f32
    %29 = vector.broadcast %cst_17 : f32 to vector<64x128xf32>
    %30 = arith.select %28, %25, %29 : vector<64x128xi1>, vector<64x128xf32>
    %cst_18 = arith.constant dense<0xFF800000> : vector<64xf32>
    %31 = vector.multi_reduction <maximumf>, %30, %cst_18 [1] : vector<64x128xf32> to vector<64xf32>
    %32 = vector.shape_cast %31 : vector<64xf32> to vector<64x1xf32>
    %33 = vector.broadcast %32 : vector<64x1xf32> to vector<64x128xf32>
    %34 = arith.subf %30, %33 : vector<64x128xf32>
    %35 = math.exp %34 : vector<64x128xf32>
    %cst_19 = arith.constant dense<0.000000e+00> : vector<64xf32>
    %36 = vector.multi_reduction <add>, %35, %cst_19 [1] : vector<64x128xf32> to vector<64xf32>
    %37 = vector.shape_cast %36 : vector<64xf32> to vector<64x1xf32>
    %38 = math.log %37 : vector<64x1xf32>
    %39 = vector.broadcast %38 : vector<64x1xf32> to vector<64x128xf32>
    %40 = arith.subf %34, %39 : vector<64x128xf32>
    %c0_20 = arith.constant 0 : index
    %c0_21 = arith.constant 0 : index
    %41 = vector.load %arg7[%c0_20, %c0_21] : memref<64x128xf32, #tpu.memory_space<vmem>>, vector<64x128xf32>
    tpu.vector_store %arg7[%c0_20, %c0_21], %40 {strides = array<i32>} : memref<64x128xf32, #tpu.memory_space<vmem>>, vector<64x128xf32>,
    return
  }
  func.func @transform_0(%arg0: i32) -> (i32, i32) {
    %c0_i32 = arith.constant 0 : i32
    %c0_i32_0 = arith.constant 0 : i32
    return %arg0, %c0_i32 : i32, i32
  }
  func.func @transform_1(%arg0: i32) -> (i32, i32) {
    %c0_i32 = arith.constant 0 : i32
    %c0_i32_0 = arith.constant 0 : i32
    %c0_i32_1 = arith.constant 0 : i32
    return %c0_i32, %c0_i32_0 : i32, i32
  }
  func.func @transform_2(%arg0: i32) -> (i32, i32) {
    %c0_i32 = arith.constant 0 : i32
    %c0_i32_0 = arith.constant 0 : i32
    %c0_i32_1 = arith.constant 0 : i32
    return %c0_i32, %c0_i32_0 : i32, i32
  }
  func.func @transform_3(%arg0: i32) -> (i32, i32) {
    %c0_i32 = arith.constant 0 : i32
    %c0_i32_0 = arith.constant 0 : i32
    %c0_i32_1 = arith.constant 0 : i32
    return %c0_i32, %c0_i32_0 : i32, i32
  }
  func.func @transform_4(%arg0: i32) -> (i32, i32) {
    %c0_i32 = arith.constant 0 : i32
    %c0_i32_0 = arith.constant 0 : i32
    %c0_i32_1 = arith.constant 0 : i32
    return %c0_i32, %c0_i32_0 : i32, i32
  }
  func.func @transform_5(%arg0: i32) -> (i32, i32) {
    %c0_i32 = arith.constant 0 : i32
    %c0_i32_0 = arith.constant 0 : i32
    %c0_i32_1 = arith.constant 0 : i32
    return %c0_i32, %c0_i32_0 : i32, i32
  }
  func.func @transform_6(%arg0: i32) -> (i32, i32) {
    %c0_i32 = arith.constant 0 : i32
    %c0_i32_0 = arith.constant 0 : i32
    return %arg0, %c0_i32 : i32, i32
  }
}

</mosaic_0001>

<llo_original>
// kernel: tpu_custom_call.1
$region0: #{tpu_custom_call.1}
  #allocation0 [shape = 'u32[]', space=smem, size = 0x4, offset = 0x4, fixed_abs, tag = 'smem constant byte address 0x4 - core index']
  #allocation1 [shape = 'u32[144,128]{1,0:T(1,128)}', space=vmem, size = 0x12000, scoped, tag = 'internal scratch']
  %s0 = inlined_call_operand.vmem [shape: s32[64,8], index: 0, kind: input, shape index: {}]
  %s1 = inlined_call_operand.vmem [shape: bf16[128,128], index: 1, kind: input, shape index: {}]
  %s2 = inlined_call_operand.hbm [shape: bf16[128,128], index: 2, kind: input, shape index: {}]
  %s3 = inlined_call_operand.vmem [shape: f32[1,128], index: 3, kind: input, shape index: {}]
  %s4 = inlined_call_operand.hbm [shape: bf16[128,128], index: 4, kind: input, shape index: {}]
  %s5 = inlined_call_operand.vmem [shape: f32[1,128], index: 5, kind: input, shape index: {}]
  %s6 = inlined_call_operand.hbm [shape: f32[64,128], index: 6, kind: output, shape index: {}]
  %s7 = sld [smem:[#allocation0]]
  $region42: #{tpu_custom_call.1} parent=0
    _
  %s9 = ssub.s32 1, %s7
  %s10 = scalar_select 0, %s9, %s7
  $region1: #{tpu_custom_call.1} parent=0
    #allocation2 [shape = 'u8[32768]{0}', space=vmem, size = 0x8000, scoped, tag = 'input window, operand 2, single buffered']
    #allocation3 [shape = 's32[1]{0}', space=sflag, size = 0x4, scoped, tag = 'scoped memory for tpu_custom_call.1']
    #allocation4 [shape = 's32[1]{0}', space=sflag, size = 0x4, scoped, tag = 'scoped memory for tpu_custom_call.1']
    #allocation5 [shape = 'u8[32768]{0}', space=vmem, size = 0x8000, scoped, tag = 'input window, operand 4, single buffered']
    #allocation6 [shape = 's32[1]{0}', space=sflag, size = 0x4, scoped, tag = 'scoped memory for tpu_custom_call.1']
    #allocation7 [shape = 'u8[32768]{0}', space=vmem, size = 0x8000, scoped, tag = 'output window, operand 0, single buffered']
    %11 = vsyncpa [#allocation3], 0
    %12 = vsyncpa [#allocation6], 0
    %13 = vsyncpa [#allocation4], 0
    // Predicated region
    $region2: #{tpu_custom_call.1} parent=1 // pred_check
      _
    $region3: #{tpu_custom_call.1} parent=1 // pred_check_branch
      %15 = sbr.rel (0) target = $region5
    $region4: #{tpu_custom_call.1} parent=1 // pred_region
      _
    $region5: #{tpu_custom_call.1} parent=1 // pred_fallthru
      _
    // Predicated region
    $region6: #{tpu_custom_call.1} parent=1 // pred_check
      _
    $region7: #{tpu_custom_call.1} parent=1 // pred_check_branch
      %17 = sbr.rel (0) target = $region9
    $region8: #{tpu_custom_call.1} parent=1 // pred_region
      _
    $region9: #{tpu_custom_call.1} parent=1 // pred_fallthru
      _
    // Predicated region
    $region10: #{tpu_custom_call.1} parent=1 // pred_check
      _
    $region11: #{tpu_custom_call.1} parent=1 // pred_check_branch
      %19 = sbr.rel (0) target = $region13
    $region12: #{tpu_custom_call.1} parent=1 // pred_region
      %s21 = ssub.s32 1024, 1024
      %22 = vsyncadd [#allocation3], %s21
      %s23 = sshll.u32 [#allocation2], 4
      %s24 = int_to_ptr.vmem [resolvable:$true] %s23
      %29 = dma.hbm_to_vmem [thread:$0]  %s2, 1024, %s24, [#allocation3], 64, 64, 4
    $region13: #{tpu_custom_call.1} parent=1 // pred_fallthru
      _
    // Predicated region
    $region14: #{tpu_custom_call.1} parent=1 // pred_check
      _
    $region15: #{tpu_custom_call.1} parent=1 // pred_check_branch
      %31 = sbr.rel (0) target = $region17
    $region16: #{tpu_custom_call.1} parent=1 // pred_region
      _
    $region17: #{tpu_custom_call.1} parent=1 // pred_fallthru
      _
    // Predicated region
    $region18: #{tpu_custom_call.1} parent=1 // pred_check
      _
    $region19: #{tpu_custom_call.1} parent=1 // pred_check_branch
      %33 = sbr.rel (0) target = $region21
    $region20: #{tpu_custom_call.1} parent=1 // pred_region
      %s35 = ssub.s32 1024, 1024
      %36 = vsyncadd [#allocation6], %s35
      %s37 = sshll.u32 [#allocation5], 4
      %s38 = int_to_ptr.vmem [resolvable:$true] %s37
      %43 = dma.hbm_to_vmem [thread:$0]  %s4, 1024, %s38, [#allocation6], 64, 64, 4
    $region21: #{tpu_custom_call.1} parent=1 // pred_fallthru
      _
    // Predicated region
    $region22: #{tpu_custom_call.1} parent=1 // pred_check
      _
    $region23: #{tpu_custom_call.1} parent=1 // pred_check_branch
      %45 = sbr.rel (0) target = $region25
    $region24: #{tpu_custom_call.1} parent=1 // pred_region
      _
    $region25: #{tpu_custom_call.1} parent=1 // pred_fallthru
      _
    // Predicated region
    $region26: #{tpu_custom_call.1} parent=1 // pred_check
      _
    $region27: #{tpu_custom_call.1} parent=1 // pred_check_branch
      %47 = sbr.rel (0) target = $region29
    $region28: #{tpu_custom_call.1} parent=1 // pred_region
      %48 = dma.done [#allocation3], 1024
    $region29: #{tpu_custom_call.1} parent=1 // pred_fallthru
      _
    // Predicated region
    $region30: #{tpu_custom_call.1} parent=1 // pred_check
      _
    $region31: #{tpu_custom_call.1} parent=1 // pred_check_branch
      %50 = sbr.rel (0) target = $region33
    $region32: #{tpu_custom_call.1} parent=1 // pred_region
      %51 = dma.done [#allocation6], 1024
    $region33: #{tpu_custom_call.1} parent=1 // pred_fallthru
      _
    %v53 = vld [vmem:[%s0] sm:$0xff]
    %v54 = vld [vmem:[%s0 + $0x8] sm:$0xff]
    %v55 = vld [vmem:[%s0 + $0x10] sm:$0xff]
    %v56 = vld [vmem:[%s0 + $0x18] sm:$0xff]
    %v57 = vld [vmem:[%s0 + $0x20] sm:$0xff]
    %v58 = vld [vmem:[%s0 + $0x28] sm:$0xff]
    %v59 = vld [vmem:[%s0 + $0x30] sm:$0xff]
    %v60 = vld [vmem:[%s0 + $0x38] sm:$0xff]
    %v61 = vlaneseq
    %v62 = vand.u32 %v61, 127
    %v63 = vlaneseq
    %v64 = vshrl.u32 %v63, 7
    %v65 = vsub.s32 0, %v64
    %v66 = vrot.slane %v53, %v65
    %68 = vbcast.lane.b32.xlu0 %v66, 256
    %v69 = vpop.permute.xlu0 %68
    %v70 = vlaneseq
    %v71 = vshrl.u32 %v70, 7
    %v72 = vsub.s32 1, %v71
    %v73 = vrot.slane %v53, %v72
    %75 = vbcast.lane.b32.xlu0 %v73, 256
    %v76 = vpop.permute.xlu0 %75
    %v77 = vlaneseq
    %v78 = vshrl.u32 %v77, 7
    %v79 = vsub.s32 2, %v78
    %v80 = vrot.slane %v53, %v79
    %82 = vbcast.lane.b32.xlu0 %v80, 256
    %v83 = vpop.permute.xlu0 %82
    %v84 = vlaneseq
    %v85 = vshrl.u32 %v84, 7
    %v86 = vsub.s32 3, %v85
    %v87 = vrot.slane %v53, %v86
    %89 = vbcast.lane.b32.xlu0 %v87, 256
    %v90 = vpop.permute.xlu0 %89
    %v91 = vlaneseq
    %v92 = vshrl.u32 %v91, 7
    %v93 = vsub.s32 4, %v92
    %v94 = vrot.slane %v53, %v93
    %96 = vbcast.lane.b32.xlu0 %v94, 256
    %v97 = vpop.permute.xlu0 %96
    %v98 = vlaneseq
    %v99 = vshrl.u32 %v98, 7
    %v100 = vsub.s32 5, %v99
    %v101 = vrot.slane %v53, %v100
    %103 = vbcast.lane.b32.xlu0 %v101, 256
    %v104 = vpop.permute.xlu0 %103
    %v105 = vlaneseq
    %v106 = vshrl.u32 %v105, 7
    %v107 = vsub.s32 6, %v106
    %v108 = vrot.slane %v53, %v107
    %110 = vbcast.lane.b32.xlu0 %v108, 256
    %v111 = vpop.permute.xlu0 %110
    %v112 = vlaneseq
    %v113 = vshrl.u32 %v112, 7
    %v114 = vsub.s32 7, %v113
    %v115 = vrot.slane %v53, %v114
    %117 = vbcast.lane.b32.xlu0 %v115, 256
    %v118 = vpop.permute.xlu0 %117
    %v119 = vlaneseq
    %v120 = vshrl.u32 %v119, 7
    %v121 = vsub.s32 0, %v120
    %v122 = vrot.slane %v54, %v121
    %124 = vbcast.lane.b32.xlu0 %v122, 256
    %v125 = vpop.permute.xlu0 %124
    %v126 = vlaneseq
    %v127 = vshrl.u32 %v126, 7
    %v128 = vsub.s32 1, %v127
    %v129 = vrot.slane %v54, %v128
    %131 = vbcast.lane.b32.xlu0 %v129, 256
    %v132 = vpop.permute.xlu0 %131
    %v133 = vlaneseq
    %v134 = vshrl.u32 %v133, 7
    %v135 = vsub.s32 2, %v134
    %v136 = vrot.slane %v54, %v135
    %138 = vbcast.lane.b32.xlu0 %v136, 256
    %v139 = vpop.permute.xlu0 %138
    %v140 = vlaneseq
    %v141 = vshrl.u32 %v140, 7
    %v142 = vsub.s32 3, %v141
    %v143 = vrot.slane %v54, %v142
    %145 = vbcast.lane.b32.xlu0 %v143, 256
    %v146 = vpop.permute.xlu0 %145
    %v147 = vlaneseq
    %v148 = vshrl.u32 %v147, 7
    %v149 = vsub.s32 4, %v148
    %v150 = vrot.slane %v54, %v149
    %152 = vbcast.lane.b32.xlu0 %v150, 256
    %v153 = vpop.permute.xlu0 %152
    %v154 = vlaneseq
    %v155 = vshrl.u32 %v154, 7
    %v156 = vsub.s32 5, %v155
    %v157 = vrot.slane %v54, %v156
    %159 = vbcast.lane.b32.xlu0 %v157, 256
    %v160 = vpop.permute.xlu0 %159
    %v161 = vlaneseq
    %v162 = vshrl.u32 %v161, 7
    %v163 = vsub.s32 6, %v162
    %v164 = vrot.slane %v54, %v163
    %166 = vbcast.lane.b32.xlu0 %v164, 256
    %v167 = vpop.permute.xlu0 %166
    %v168 = vlaneseq
    %v169 = vshrl.u32 %v168, 7
    %v170 = vsub.s32 7, %v169
    %v171 = vrot.slane %v54, %v170
    %173 = vbcast.lane.b32.xlu0 %v171, 256
    %v174 = vpop.permute.xlu0 %173
    %v175 = vlaneseq
    %v176 = vshrl.u32 %v175, 7
    %v177 = vsub.s32 0, %v176
    %v178 = vrot.slane %v55, %v177
    %180 = vbcast.lane.b32.xlu0 %v178, 256
    %v181 = vpop.permute.xlu0 %180
    %v182 = vlaneseq
    %v183 = vshrl.u32 %v182, 7
    %v184 = vsub.s32 1, %v183
    %v185 = vrot.slane %v55, %v184
    %187 = vbcast.lane.b32.xlu0 %v185, 256
    %v188 = vpop.permute.xlu0 %187
    %v189 = vlaneseq
    %v190 = vshrl.u32 %v189, 7
    %v191 = vsub.s32 2, %v190
    %v192 = vrot.slane %v55, %v191
    %194 = vbcast.lane.b32.xlu0 %v192, 256
    %v195 = vpop.permute.xlu0 %194
    %v196 = vlaneseq
    %v197 = vshrl.u32 %v196, 7
    %v198 = vsub.s32 3, %v197
    %v199 = vrot.slane %v55, %v198
    %201 = vbcast.lane.b32.xlu0 %v199, 256
    %v202 = vpop.permute.xlu0 %201
    %v203 = vlaneseq
    %v204 = vshrl.u32 %v203, 7
    %v205 = vsub.s32 4, %v204
    %v206 = vrot.slane %v55, %v205
    %208 = vbcast.lane.b32.xlu0 %v206, 256
    %v209 = vpop.permute.xlu0 %208
    %v210 = vlaneseq
    %v211 = vshrl.u32 %v210, 7
    %v212 = vsub.s32 5, %v211
    %v213 = vrot.slane %v55, %v212
    %215 = vbcast.lane.b32.xlu0 %v213, 256
    %v216 = vpop.permute.xlu0 %215
    %v217 = vlaneseq
    %v218 = vshrl.u32 %v217, 7
    %v219 = vsub.s32 6, %v218
    %v220 = vrot.slane %v55, %v219
    %222 = vbcast.lane.b32.xlu0 %v220, 256
    %v223 = vpop.permute.xlu0 %222
    %v224 = vlaneseq
    %v225 = vshrl.u32 %v224, 7
    %v226 = vsub.s32 7, %v225
    %v227 = vrot.slane %v55, %v226
    %229 = vbcast.lane.b32.xlu0 %v227, 256
    %v230 = vpop.permute.xlu0 %229
    %v231 = vlaneseq
    %v232 = vshrl.u32 %v231, 7
    %v233 = vsub.s32 0, %v232
    %v234 = vrot.slane %v56, %v233
    %236 = vbcast.lane.b32.xlu0 %v234, 256
    %v237 = vpop.permute.xlu0 %236
    %v238 = vlaneseq
    %v239 = vshrl.u32 %v238, 7
    %v240 = vsub.s32 1, %v239
    %v241 = vrot.slane %v56, %v240
    %243 = vbcast.lane.b32.xlu0 %v241, 256
    %v244 = vpop.permute.xlu0 %243
    %v245 = vlaneseq
    %v246 = vshrl.u32 %v245, 7
    %v247 = vsub.s32 2, %v246
    %v248 = vrot.slane %v56, %v247
    %250 = vbcast.lane.b32.xlu0 %v248, 256
    %v251 = vpop.permute.xlu0 %250
    %v252 = vlaneseq
    %v253 = vshrl.u32 %v252, 7
    %v254 = vsub.s32 3, %v253
    %v255 = vrot.slane %v56, %v254
    %257 = vbcast.lane.b32.xlu0 %v255, 256
    %v258 = vpop.permute.xlu0 %257
    %v259 = vlaneseq
    %v260 = vshrl.u32 %v259, 7
    %v261 = vsub.s32 4, %v260
    %v262 = vrot.slane %v56, %v261
    %264 = vbcast.lane.b32.xlu0 %v262, 256
    %v265 = vpop.permute.xlu0 %264
    %v266 = vlaneseq
    %v267 = vshrl.u32 %v266, 7
    %v268 = vsub.s32 5, %v267
    %v269 = vrot.slane %v56, %v268
    %271 = vbcast.lane.b32.xlu0 %v269, 256
    %v272 = vpop.permute.xlu0 %271
    %v273 = vlaneseq
    %v274 = vshrl.u32 %v273, 7
    %v275 = vsub.s32 6, %v274
    %v276 = vrot.slane %v56, %v275
    %278 = vbcast.lane.b32.xlu0 %v276, 256
    %v279 = vpop.permute.xlu0 %278
    %v280 = vlaneseq
    %v281 = vshrl.u32 %v280, 7
    %v282 = vsub.s32 7, %v281
    %v283 = vrot.slane %v56, %v282
    %285 = vbcast.lane.b32.xlu0 %v283, 256
    %v286 = vpop.permute.xlu0 %285
    %v287 = vlaneseq
    %v288 = vshrl.u32 %v287, 7
    %v289 = vsub.s32 0, %v288
    %v290 = vrot.slane %v57, %v289
    %292 = vbcast.lane.b32.xlu0 %v290, 256
    %v293 = vpop.permute.xlu0 %292
    %v294 = vlaneseq
    %v295 = vshrl.u32 %v294, 7
    %v296 = vsub.s32 1, %v295
    %v297 = vrot.slane %v57, %v296
    %299 = vbcast.lane.b32.xlu0 %v297, 256
    %v300 = vpop.permute.xlu0 %299
    %v301 = vlaneseq
    %v302 = vshrl.u32 %v301, 7
    %v303 = vsub.s32 2, %v302
    %v304 = vrot.slane %v57, %v303
    %306 = vbcast.lane.b32.xlu0 %v304, 256
    %v307 = vpop.permute.xlu0 %306
    %v308 = vlaneseq
    %v309 = vshrl.u32 %v308, 7
    %v310 = vsub.s32 3, %v309
    %v311 = vrot.slane %v57, %v310
    %313 = vbcast.lane.b32.xlu0 %v311, 256
    %v314 = vpop.permute.xlu0 %313
    %v315 = vlaneseq
    %v316 = vshrl.u32 %v315, 7
    %v317 = vsub.s32 4, %v316
    %v318 = vrot.slane %v57, %v317
    %320 = vbcast.lane.b32.xlu0 %v318, 256
    %v321 = vpop.permute.xlu0 %320
    %v322 = vlaneseq
    %v323 = vshrl.u32 %v322, 7
    %v324 = vsub.s32 5, %v323
    %v325 = vrot.slane %v57, %v324
    %327 = vbcast.lane.b32.xlu0 %v325, 256
    %v328 = vpop.permute.xlu0 %327
    %v329 = vlaneseq
    %v330 = vshrl.u32 %v329, 7
    %v331 = vsub.s32 6, %v330
    %v332 = vrot.slane %v57, %v331
    %334 = vbcast.lane.b32.xlu0 %v332, 256
    %v335 = vpop.permute.xlu0 %334
    %v336 = vlaneseq
    %v337 = vshrl.u32 %v336, 7
    %v338 = vsub.s32 7, %v337
    %v339 = vrot.slane %v57, %v338
    %341 = vbcast.lane.b32.xlu0 %v339, 256
    %v342 = vpop.permute.xlu0 %341
    %v343 = vlaneseq
    %v344 = vshrl.u32 %v343, 7
    %v345 = vsub.s32 0, %v344
    %v346 = vrot.slane %v58, %v345
    %348 = vbcast.lane.b32.xlu0 %v346, 256
    %v349 = vpop.permute.xlu0 %348
    %v350 = vlaneseq
    %v351 = vshrl.u32 %v350, 7
    %v352 = vsub.s32 1, %v351
    %v353 = vrot.slane %v58, %v352
    %355 = vbcast.lane.b32.xlu0 %v353, 256
    %v356 = vpop.permute.xlu0 %355
    %v357 = vlaneseq
    %v358 = vshrl.u32 %v357, 7
    %v359 = vsub.s32 2, %v358
    %v360 = vrot.slane %v58, %v359
    %362 = vbcast.lane.b32.xlu0 %v360, 256
    %v363 = vpop.permute.xlu0 %362
    %v364 = vlaneseq
    %v365 = vshrl.u32 %v364, 7
    %v366 = vsub.s32 3, %v365
    %v367 = vrot.slane %v58, %v366
    %369 = vbcast.lane.b32.xlu0 %v367, 256
    %v370 = vpop.permute.xlu0 %369
    %v371 = vlaneseq
    %v372 = vshrl.u32 %v371, 7
    %v373 = vsub.s32 4, %v372
    %v374 = vrot.slane %v58, %v373
    %376 = vbcast.lane.b32.xlu0 %v374, 256
    %v377 = vpop.permute.xlu0 %376
    %v378 = vlaneseq
    %v379 = vshrl.u32 %v378, 7
    %v380 = vsub.s32 5, %v379
    %v381 = vrot.slane %v58, %v380
    %383 = vbcast.lane.b32.xlu0 %v381, 256
    %v384 = vpop.permute.xlu0 %383
    %v385 = vlaneseq
    %v386 = vshrl.u32 %v385, 7
    %v387 = vsub.s32 6, %v386
    %v388 = vrot.slane %v58, %v387
    %390 = vbcast.lane.b32.xlu0 %v388, 256
    %v391 = vpop.permute.xlu0 %390
    %v392 = vlaneseq
    %v393 = vshrl.u32 %v392, 7
    %v394 = vsub.s32 7, %v393
    %v395 = vrot.slane %v58, %v394
    %397 = vbcast.lane.b32.xlu0 %v395, 256
    %v398 = vpop.permute.xlu0 %397
    %v399 = vlaneseq
    %v400 = vshrl.u32 %v399, 7
    %v401 = vsub.s32 0, %v400
    %v402 = vrot.slane %v59, %v401
    %404 = vbcast.lane.b32.xlu0 %v402, 256
    %v405 = vpop.permute.xlu0 %404
    %v406 = vlaneseq
    %v407 = vshrl.u32 %v406, 7
    %v408 = vsub.s32 1, %v407
    %v409 = vrot.slane %v59, %v408
    %411 = vbcast.lane.b32.xlu0 %v409, 256
    %v412 = vpop.permute.xlu0 %411
    %v413 = vlaneseq
    %v414 = vshrl.u32 %v413, 7
    %v415 = vsub.s32 2, %v414
    %v416 = vrot.slane %v59, %v415
    %418 = vbcast.lane.b32.xlu0 %v416, 256
    %v419 = vpop.permute.xlu0 %418
    %v420 = vlaneseq
    %v421 = vshrl.u32 %v420, 7
    %v422 = vsub.s32 3, %v421
    %v423 = vrot.slane %v59, %v422
    %425 = vbcast.lane.b32.xlu0 %v423, 256
    %v426 = vpop.permute.xlu0 %425
    %v427 = vlaneseq
    %v428 = vshrl.u32 %v427, 7
    %v429 = vsub.s32 4, %v428
    %v430 = vrot.slane %v59, %v429
    %432 = vbcast.lane.b32.xlu0 %v430, 256
    %v433 = vpop.permute.xlu0 %432
    %v434 = vlaneseq
    %v435 = vshrl.u32 %v434, 7
    %v436 = vsub.s32 5, %v435
    %v437 = vrot.slane %v59, %v436
    %439 = vbcast.lane.b32.xlu0 %v437, 256
    %v440 = vpop.permute.xlu0 %439
    %v441 = vlaneseq
    %v442 = vshrl.u32 %v441, 7
    %v443 = vsub.s32 6, %v442
    %v444 = vrot.slane %v59, %v443
    %446 = vbcast.lane.b32.xlu0 %v444, 256
    %v447 = vpop.permute.xlu0 %446
    %v448 = vlaneseq
    %v449 = vshrl.u32 %v448, 7
    %v450 = vsub.s32 7, %v449
    %v451 = vrot.slane %v59, %v450
    %453 = vbcast.lane.b32.xlu0 %v451, 256
    %v454 = vpop.permute.xlu0 %453
    %v455 = vlaneseq
    %v456 = vshrl.u32 %v455, 7
    %v457 = vsub.s32 0, %v456
    %v458 = vrot.slane %v60, %v457
    %460 = vbcast.lane.b32.xlu0 %v458, 256
    %v461 = vpop.permute.xlu0 %460
    %v462 = vlaneseq
    %v463 = vshrl.u32 %v462, 7
    %v464 = vsub.s32 1, %v463
    %v465 = vrot.slane %v60, %v464
    %467 = vbcast.lane.b32.xlu0 %v465, 256
    %v468 = vpop.permute.xlu0 %467
    %v469 = vlaneseq
    %v470 = vshrl.u32 %v469, 7
    %v471 = vsub.s32 2, %v470
    %v472 = vrot.slane %v60, %v471
    %474 = vbcast.lane.b32.xlu0 %v472, 256
    %v475 = vpop.permute.xlu0 %474
    %v476 = vlaneseq
    %v477 = vshrl.u32 %v476, 7
    %v478 = vsub.s32 3, %v477
    %v479 = vrot.slane %v60, %v478
    %481 = vbcast.lane.b32.xlu0 %v479, 256
    %v482 = vpop.permute.xlu0 %481
    %v483 = vlaneseq
    %v484 = vshrl.u32 %v483, 7
    %v485 = vsub.s32 4, %v484
    %v486 = vrot.slane %v60, %v485
    %488 = vbcast.lane.b32.xlu0 %v486, 256
    %v489 = vpop.permute.xlu0 %488
    %v490 = vlaneseq
    %v491 = vshrl.u32 %v490, 7
    %v492 = vsub.s32 5, %v491
    %v493 = vrot.slane %v60, %v492
    %495 = vbcast.lane.b32.xlu0 %v493, 256
    %v496 = vpop.permute.xlu0 %495
    %v497 = vlaneseq
    %v498 = vshrl.u32 %v497, 7
    %v499 = vsub.s32 6, %v498
    %v500 = vrot.slane %v60, %v499
    %502 = vbcast.lane.b32.xlu0 %v500, 256
    %v503 = vpop.permute.xlu0 %502
    %v504 = vlaneseq
    %v505 = vshrl.u32 %v504, 7
    %v506 = vsub.s32 7, %v505
    %v507 = vrot.slane %v60, %v506
    %509 = vbcast.lane.b32.xlu0 %v507, 256
    %v510 = vpop.permute.xlu0 %509
    %vm511 = vcmp.eq.s32.totalorder %v69, %v62
    %vm512 = vcmp.eq.s32.totalorder %v76, %v62
    %vm513 = vcmp.eq.s32.totalorder %v83, %v62
    %vm514 = vcmp.eq.s32.totalorder %v90, %v62
    %vm515 = vcmp.eq.s32.totalorder %v97, %v62
    %vm516 = vcmp.eq.s32.totalorder %v104, %v62
    %vm517 = vcmp.eq.s32.totalorder %v111, %v62
    %vm518 = vcmp.eq.s32.totalorder %v118, %v62
    %vm519 = vcmp.eq.s32.totalorder %v125, %v62
    %vm520 = vcmp.eq.s32.totalorder %v132, %v62
    %vm521 = vcmp.eq.s32.totalorder %v139, %v62
    %vm522 = vcmp.eq.s32.totalorder %v146, %v62
    %vm523 = vcmp.eq.s32.totalorder %v153, %v62
    %vm524 = vcmp.eq.s32.totalorder %v160, %v62
    %vm525 = vcmp.eq.s32.totalorder %v167, %v62
    %vm526 = vcmp.eq.s32.totalorder %v174, %v62
    %vm527 = vcmp.eq.s32.totalorder %v181, %v62
    %vm528 = vcmp.eq.s32.totalorder %v188, %v62
    %vm529 = vcmp.eq.s32.totalorder %v195, %v62
    %vm530 = vcmp.eq.s32.totalorder %v202, %v62
    %vm531 = vcmp.eq.s32.totalorder %v209, %v62
    %vm532 = vcmp.eq.s32.totalorder %v216, %v62
    %vm533 = vcmp.eq.s32.totalorder %v223, %v62
    %vm534 = vcmp.eq.s32.totalorder %v230, %v62
    %vm535 = vcmp.eq.s32.totalorder %v237, %v62
    %vm536 = vcmp.eq.s32.totalorder %v244, %v62
    %vm537 = vcmp.eq.s32.totalorder %v251, %v62
    %vm538 = vcmp.eq.s32.totalorder %v258, %v62
    %vm539 = vcmp.eq.s32.totalorder %v265, %v62
    %vm540 = vcmp.eq.s32.totalorder %v272, %v62
    %vm541 = vcmp.eq.s32.totalorder %v279, %v62
    %vm542 = vcmp.eq.s32.totalorder %v286, %v62
    %vm543 = vcmp.eq.s32.totalorder %v293, %v62
    %vm544 = vcmp.eq.s32.totalorder %v300, %v62
    %vm545 = vcmp.eq.s32.totalorder %v307, %v62
    %vm546 = vcmp.eq.s32.totalorder %v314, %v62
    %vm547 = vcmp.eq.s32.totalorder %v321, %v62
    %vm548 = vcmp.eq.s32.totalorder %v328, %v62
    %vm549 = vcmp.eq.s32.totalorder %v335, %v62
    %vm550 = vcmp.eq.s32.totalorder %v342, %v62
    %vm551 = vcmp.eq.s32.totalorder %v349, %v62
    %vm552 = vcmp.eq.s32.totalorder %v356, %v62
    %vm553 = vcmp.eq.s32.totalorder %v363, %v62
    %vm554 = vcmp.eq.s32.totalorder %v370, %v62
    %vm555 = vcmp.eq.s32.totalorder %v377, %v62
    %vm556 = vcmp.eq.s32.totalorder %v384, %v62
    %vm557 = vcmp.eq.s32.totalorder %v391, %v62
    %vm558 = vcmp.eq.s32.totalorder %v398, %v62
    %vm559 = vcmp.eq.s32.totalorder %v405, %v62
    %vm560 = vcmp.eq.s32.totalorder %v412, %v62
    %vm561 = vcmp.eq.s32.totalorder %v419, %v62
    %vm562 = vcmp.eq.s32.totalorder %v426, %v62
    %vm563 = vcmp.eq.s32.totalorder %v433, %v62
    %vm564 = vcmp.eq.s32.totalorder %v440, %v62
    %vm565 = vcmp.eq.s32.totalorder %v447, %v62
    %vm566 = vcmp.eq.s32.totalorder %v454, %v62
    %vm567 = vcmp.eq.s32.totalorder %v461, %v62
    %vm568 = vcmp.eq.s32.totalorder %v468, %v62
    %vm569 = vcmp.eq.s32.totalorder %v475, %v62
    %vm570 = vcmp.eq.s32.totalorder %v482, %v62
    %vm571 = vcmp.eq.s32.totalorder %v489, %v62
    %vm572 = vcmp.eq.s32.totalorder %v496, %v62
    %vm573 = vcmp.eq.s32.totalorder %v503, %v62
    %vm574 = vcmp.eq.s32.totalorder %v510, %v62
    %v575 = vsel %vm511, 0.125, 0.0
    %v576 = vsel %vm512, 0.125, 0.0
    %v577 = vsel %vm513, 0.125, 0.0
    %v578 = vsel %vm514, 0.125, 0.0
    %v579 = vsel %vm515, 0.125, 0.0
    %v580 = vsel %vm516, 0.125, 0.0
    %v581 = vsel %vm517, 0.125, 0.0
    %v582 = vsel %vm518, 0.125, 0.0
    %v583 = vsel %vm519, 0.125, 0.0
    %v584 = vsel %vm520, 0.125, 0.0
    %v585 = vsel %vm521, 0.125, 0.0
    %v586 = vsel %vm522, 0.125, 0.0
    %v587 = vsel %vm523, 0.125, 0.0
    %v588 = vsel %vm524, 0.125, 0.0
    %v589 = vsel %vm525, 0.125, 0.0
    %v590 = vsel %vm526, 0.125, 0.0
    %v591 = vsel %vm527, 0.125, 0.0
    %v592 = vsel %vm528, 0.125, 0.0
    %v593 = vsel %vm529, 0.125, 0.0
    %v594 = vsel %vm530, 0.125, 0.0
    %v595 = vsel %vm531, 0.125, 0.0
    %v596 = vsel %vm532, 0.125, 0.0
    %v597 = vsel %vm533, 0.125, 0.0
    %v598 = vsel %vm534, 0.125, 0.0
    %v599 = vsel %vm535, 0.125, 0.0
    %v600 = vsel %vm536, 0.125, 0.0
    %v601 = vsel %vm537, 0.125, 0.0
    %v602 = vsel %vm538, 0.125, 0.0
    %v603 = vsel %vm539, 0.125, 0.0
    %v604 = vsel %vm540, 0.125, 0.0
    %v605 = vsel %vm541, 0.125, 0.0
    %v606 = vsel %vm542, 0.125, 0.0
    %v607 = vsel %vm543, 0.125, 0.0
    %v608 = vsel %vm544, 0.125, 0.0
    %v609 = vsel %vm545, 0.125, 0.0
    %v610 = vsel %vm546, 0.125, 0.0
    %v611 = vsel %vm547, 0.125, 0.0
    %v612 = vsel %vm548, 0.125, 0.0
    %v613 = vsel %vm549, 0.125, 0.0
    %v614 = vsel %vm550, 0.125, 0.0
    %v615 = vsel %vm551, 0.125, 0.0
    %v616 = vsel %vm552, 0.125, 0.0
    %v617 = vsel %vm553, 0.125, 0.0
    %v618 = vsel %vm554, 0.125, 0.0
    %v619 = vsel %vm555, 0.125, 0.0
    %v620 = vsel %vm556, 0.125, 0.0
    %v621 = vsel %vm557, 0.125, 0.0
    %v622 = vsel %vm558, 0.125, 0.0
    %v623 = vsel %vm559, 0.125, 0.0
    %v624 = vsel %vm560, 0.125, 0.0
    %v625 = vsel %vm561, 0.125, 0.0
    %v626 = vsel %vm562, 0.125, 0.0
    %v627 = vsel %vm563, 0.125, 0.0
    %v628 = vsel %vm564, 0.125, 0.0
    %v629 = vsel %vm565, 0.125, 0.0
    %v630 = vsel %vm566, 0.125, 0.0
    %v631 = vsel %vm567, 0.125, 0.0
    %v632 = vsel %vm568, 0.125, 0.0
    %v633 = vsel %vm569, 0.125, 0.0
    %v634 = vsel %vm570, 0.125, 0.0
    %v635 = vsel %vm571, 0.125, 0.0
    %v636 = vsel %vm572, 0.125, 0.0
    %v637 = vsel %vm573, 0.125, 0.0
    %v638 = vsel %vm574, 0.125, 0.0
    %v639 = vrot.slane %v575, 4
    %v640 = vadd.f32 %v575, %v639
    %v641 = vrot.slane %v640, 2
    %v642 = vadd.f32 %v640, %v641
    %v643 = vrot.slane %v642, 1
    %v644 = vadd.f32 %v642, %v643
    %v645 = vrot.slane %v576, 4
    %v646 = vadd.f32 %v576, %v645
    %v647 = vrot.slane %v646, 2
    %v648 = vadd.f32 %v646, %v647
    %v649 = vrot.slane %v648, 1
    %v650 = vadd.f32 %v648, %v649
    %v651 = vrot.slane %v577, 4
    %v652 = vadd.f32 %v577, %v651
    %v653 = vrot.slane %v652, 2
    %v654 = vadd.f32 %v652, %v653
    %v655 = vrot.slane %v654, 1
    %v656 = vadd.f32 %v654, %v655
    %v657 = vrot.slane %v578, 4
    %v658 = vadd.f32 %v578, %v657
    %v659 = vrot.slane %v658, 2
    %v660 = vadd.f32 %v658, %v659
    %v661 = vrot.slane %v660, 1
    %v662 = vadd.f32 %v660, %v661
    %v663 = vrot.slane %v579, 4
    %v664 = vadd.f32 %v579, %v663
    %v665 = vrot.slane %v664, 2
    %v666 = vadd.f32 %v664, %v665
    %v667 = vrot.slane %v666, 1
    %v668 = vadd.f32 %v666, %v667
    %v669 = vrot.slane %v580, 4
    %v670 = vadd.f32 %v580, %v669
    %v671 = vrot.slane %v670, 2
    %v672 = vadd.f32 %v670, %v671
    %v673 = vrot.slane %v672, 1
    %v674 = vadd.f32 %v672, %v673
    %v675 = vrot.slane %v581, 4
    %v676 = vadd.f32 %v581, %v675
    %v677 = vrot.slane %v676, 2
    %v678 = vadd.f32 %v676, %v677
    %v679 = vrot.slane %v678, 1
    %v680 = vadd.f32 %v678, %v679
    %v681 = vrot.slane %v582, 4
    %v682 = vadd.f32 %v582, %v681
    %v683 = vrot.slane %v682, 2
    %v684 = vadd.f32 %v682, %v683
    %v685 = vrot.slane %v684, 1
    %v686 = vadd.f32 %v684, %v685
    %v687 = vrot.slane %v583, 4
    %v688 = vadd.f32 %v583, %v687
    %v689 = vrot.slane %v688, 2
    %v690 = vadd.f32 %v688, %v689
    %v691 = vrot.slane %v690, 1
    %v692 = vadd.f32 %v690, %v691
    %v693 = vrot.slane %v584, 4
    %v694 = vadd.f32 %v584, %v693
    %v695 = vrot.slane %v694, 2
    %v696 = vadd.f32 %v694, %v695
    %v697 = vrot.slane %v696, 1
    %v698 = vadd.f32 %v696, %v697
    %v699 = vrot.slane %v585, 4
    %v700 = vadd.f32 %v585, %v699
    %v701 = vrot.slane %v700, 2
    %v702 = vadd.f32 %v700, %v701
    %v703 = vrot.slane %v702, 1
    %v704 = vadd.f32 %v702, %v703
    %v705 = vrot.slane %v586, 4
    %v706 = vadd.f32 %v586, %v705
    %v707 = vrot.slane %v706, 2
    %v708 = vadd.f32 %v706, %v707
    %v709 = vrot.slane %v708, 1
    %v710 = vadd.f32 %v708, %v709
    %v711 = vrot.slane %v587, 4
    %v712 = vadd.f32 %v587, %v711
    %v713 = vrot.slane %v712, 2
    %v714 = vadd.f32 %v712, %v713
    %v715 = vrot.slane %v714, 1
    %v716 = vadd.f32 %v714, %v715
    %v717 = vrot.slane %v588, 4
    %v718 = vadd.f32 %v588, %v717
    %v719 = vrot.slane %v718, 2
    %v720 = vadd.f32 %v718, %v719
    %v721 = vrot.slane %v720, 1
    %v722 = vadd.f32 %v720, %v721
    %v723 = vrot.slane %v589, 4
    %v724 = vadd.f32 %v589, %v723
    %v725 = vrot.slane %v724, 2
    %v726 = vadd.f32 %v724, %v725
    %v727 = vrot.slane %v726, 1
    %v728 = vadd.f32 %v726, %v727
    %v729 = vrot.slane %v590, 4
    %v730 = vadd.f32 %v590, %v729
    %v731 = vrot.slane %v730, 2
    %v732 = vadd.f32 %v730, %v731
    %v733 = vrot.slane %v732, 1
    %v734 = vadd.f32 %v732, %v733
    %v735 = vrot.slane %v591, 4
    %v736 = vadd.f32 %v591, %v735
    %v737 = vrot.slane %v736, 2
    %v738 = vadd.f32 %v736, %v737
    %v739 = vrot.slane %v738, 1
    %v740 = vadd.f32 %v738, %v739
    %v741 = vrot.slane %v592, 4
    %v742 = vadd.f32 %v592, %v741
    %v743 = vrot.slane %v742, 2
    %v744 = vadd.f32 %v742, %v743
    %v745 = vrot.slane %v744, 1
    %v746 = vadd.f32 %v744, %v745
    %v747 = vrot.slane %v593, 4
    %v748 = vadd.f32 %v593, %v747
    %v749 = vrot.slane %v748, 2
    %v750 = vadd.f32 %v748, %v749
    %v751 = vrot.slane %v750, 1
    %v752 = vadd.f32 %v750, %v751
    %v753 = vrot.slane %v594, 4
    %v754 = vadd.f32 %v594, %v753
    %v755 = vrot.slane %v754, 2
    %v756 = vadd.f32 %v754, %v755
    %v757 = vrot.slane %v756, 1
    %v758 = vadd.f32 %v756, %v757
    %v759 = vrot.slane %v595, 4
    %v760 = vadd.f32 %v595, %v759
    %v761 = vrot.slane %v760, 2
    %v762 = vadd.f32 %v760, %v761
    %v763 = vrot.slane %v762, 1
    %v764 = vadd.f32 %v762, %v763
    %v765 = vrot.slane %v596, 4
    %v766 = vadd.f32 %v596, %v765
    %v767 = vrot.slane %v766, 2
    %v768 = vadd.f32 %v766, %v767
    %v769 = vrot.slane %v768, 1
    %v770 = vadd.f32 %v768, %v769
    %v771 = vrot.slane %v597, 4
    %v772 = vadd.f32 %v597, %v771
    %v773 = vrot.slane %v772, 2
    %v774 = vadd.f32 %v772, %v773
    %v775 = vrot.slane %v774, 1
    %v776 = vadd.f32 %v774, %v775
    %v777 = vrot.slane %v598, 4
    %v778 = vadd.f32 %v598, %v777
    %v779 = vrot.slane %v778, 2
    %v780 = vadd.f32 %v778, %v779
    %v781 = vrot.slane %v780, 1
    %v782 = vadd.f32 %v780, %v781
    %v783 = vrot.slane %v599, 4
    %v784 = vadd.f32 %v599, %v783
    %v785 = vrot.slane %v784, 2
    %v786 = vadd.f32 %v784, %v785
    %v787 = vrot.slane %v786, 1
    %v788 = vadd.f32 %v786, %v787
    %v789 = vrot.slane %v600, 4
    %v790 = vadd.f32 %v600, %v789
    %v791 = vrot.slane %v790, 2
    %v792 = vadd.f32 %v790, %v791
    %v793 = vrot.slane %v792, 1
    %v794 = vadd.f32 %v792, %v793
    %v795 = vrot.slane %v601, 4
    %v796 = vadd.f32 %v601, %v795
    %v797 = vrot.slane %v796, 2
    %v798 = vadd.f32 %v796, %v797
    %v799 = vrot.slane %v798, 1
    %v800 = vadd.f32 %v798, %v799
    %v801 = vrot.slane %v602, 4
    %v802 = vadd.f32 %v602, %v801
    %v803 = vrot.slane %v802, 2
    %v804 = vadd.f32 %v802, %v803
    %v805 = vrot.slane %v804, 1
    %v806 = vadd.f32 %v804, %v805
    %v807 = vrot.slane %v603, 4
    %v808 = vadd.f32 %v603, %v807
    %v809 = vrot.slane %v808, 2
    %v810 = vadd.f32 %v808, %v809
    %v811 = vrot.slane %v810, 1
    %v812 = vadd.f32 %v810, %v811
    %v813 = vrot.slane %v604, 4
    %v814 = vadd.f32 %v604, %v813
    %v815 = vrot.slane %v814, 2
    %v816 = vadd.f32 %v814, %v815
    %v817 = vrot.slane %v816, 1
    %v818 = vadd.f32 %v816, %v817
    %v819 = vrot.slane %v605, 4
    %v820 = vadd.f32 %v605, %v819
    %v821 = vrot.slane %v820, 2
    %v822 = vadd.f32 %v820, %v821
    %v823 = vrot.slane %v822, 1
    %v824 = vadd.f32 %v822, %v823
    %v825 = vrot.slane %v606, 4
    %v826 = vadd.f32 %v606, %v825
    %v827 = vrot.slane %v826, 2
    %v828 = vadd.f32 %v826, %v827
    %v829 = vrot.slane %v828, 1
    %v830 = vadd.f32 %v828, %v829
    %v831 = vrot.slane %v607, 4
    %v832 = vadd.f32 %v607, %v831
    %v833 = vrot.slane %v832, 2
    %v834 = vadd.f32 %v832, %v833
    %v835 = vrot.slane %v834, 1
    %v836 = vadd.f32 %v834, %v835
    %v837 = vrot.slane %v608, 4
    %v838 = vadd.f32 %v608, %v837
    %v839 = vrot.slane %v838, 2
    %v840 = vadd.f32 %v838, %v839
    %v841 = vrot.slane %v840, 1
    %v842 = vadd.f32 %v840, %v841
    %v843 = vrot.slane %v609, 4
    %v844 = vadd.f32 %v609, %v843
    %v845 = vrot.slane %v844, 2
    %v846 = vadd.f32 %v844, %v845
    %v847 = vrot.slane %v846, 1
    %v848 = vadd.f32 %v846, %v847
    %v849 = vrot.slane %v610, 4
    %v850 = vadd.f32 %v610, %v849
    %v851 = vrot.slane %v850, 2
    %v852 = vadd.f32 %v850, %v851
    %v853 = vrot.slane %v852, 1
    %v854 = vadd.f32 %v852, %v853
    %v855 = vrot.slane %v611, 4
    %v856 = vadd.f32 %v611, %v855
    %v857 = vrot.slane %v856, 2
    %v858 = vadd.f32 %v856, %v857
    %v859 = vrot.slane %v858, 1
    %v860 = vadd.f32 %v858, %v859
    %v861 = vrot.slane %v612, 4
    %v862 = vadd.f32 %v612, %v861
    %v863 = vrot.slane %v862, 2
    %v864 = vadd.f32 %v862, %v863
    %v865 = vrot.slane %v864, 1
    %v866 = vadd.f32 %v864, %v865
    %v867 = vrot.slane %v613, 4
    %v868 = vadd.f32 %v613, %v867
    %v869 = vrot.slane %v868, 2
    %v870 = vadd.f32 %v868, %v869
    %v871 = vrot.slane %v870, 1
    %v872 = vadd.f32 %v870, %v871
    %v873 = vrot.slane %v614, 4
    %v874 = vadd.f32 %v614, %v873
    %v875 = vrot.slane %v874, 2
    %v876 = vadd.f32 %v874, %v875
    %v877 = vrot.slane %v876, 1
    %v878 = vadd.f32 %v876, %v877
    %v879 = vrot.slane %v615, 4
    %v880 = vadd.f32 %v615, %v879
    %v881 = vrot.slane %v880, 2
    %v882 = vadd.f32 %v880, %v881
    %v883 = vrot.slane %v882, 1
    %v884 = vadd.f32 %v882, %v883
    %v885 = vrot.slane %v616, 4
    %v886 = vadd.f32 %v616, %v885
    %v887 = vrot.slane %v886, 2
    %v888 = vadd.f32 %v886, %v887
    %v889 = vrot.slane %v888, 1
    %v890 = vadd.f32 %v888, %v889
    %v891 = vrot.slane %v617, 4
    %v892 = vadd.f32 %v617, %v891
    %v893 = vrot.slane %v892, 2
    %v894 = vadd.f32 %v892, %v893
    %v895 = vrot.slane %v894, 1
    %v896 = vadd.f32 %v894, %v895
    %v897 = vrot.slane %v618, 4
    %v898 = vadd.f32 %v618, %v897
    %v899 = vrot.slane %v898, 2
    %v900 = vadd.f32 %v898, %v899
    %v901 = vrot.slane %v900, 1
    %v902 = vadd.f32 %v900, %v901
    %v903 = vrot.slane %v619, 4
    %v904 = vadd.f32 %v619, %v903
    %v905 = vrot.slane %v904, 2
    %v906 = vadd.f32 %v904, %v905
    %v907 = vrot.slane %v906, 1
    %v908 = vadd.f32 %v906, %v907
    %v909 = vrot.slane %v620, 4
    %v910 = vadd.f32 %v620, %v909
    %v911 = vrot.slane %v910, 2
    %v912 = vadd.f32 %v910, %v911
    %v913 = vrot.slane %v912, 1
    %v914 = vadd.f32 %v912, %v913
    %v915 = vrot.slane %v621, 4
    %v916 = vadd.f32 %v621, %v915
    %v917 = vrot.slane %v916, 2
    %v918 = vadd.f32 %v916, %v917
    %v919 = vrot.slane %v918, 1
    %v920 = vadd.f32 %v918, %v919
    %v921 = vrot.slane %v622, 4
    %v922 = vadd.f32 %v622, %v921
    %v923 = vrot.slane %v922, 2
    %v924 = vadd.f32 %v922, %v923
    %v925 = vrot.slane %v924, 1
    %v926 = vadd.f32 %v924, %v925
    %v927 = vrot.slane %v623, 4
    %v928 = vadd.f32 %v623, %v927
    %v929 = vrot.slane %v928, 2
    %v930 = vadd.f32 %v928, %v929
    %v931 = vrot.slane %v930, 1
    %v932 = vadd.f32 %v930, %v931
    %v933 = vrot.slane %v624, 4
    %v934 = vadd.f32 %v624, %v933
    %v935 = vrot.slane %v934, 2
    %v936 = vadd.f32 %v934, %v935
    %v937 = vrot.slane %v936, 1
    %v938 = vadd.f32 %v936, %v937
    %v939 = vrot.slane %v625, 4
    %v940 = vadd.f32 %v625, %v939
    %v941 = vrot.slane %v940, 2
    %v942 = vadd.f32 %v940, %v941
    %v943 = vrot.slane %v942, 1
    %v944 = vadd.f32 %v942, %v943
    %v945 = vrot.slane %v626, 4
    %v946 = vadd.f32 %v626, %v945
    %v947 = vrot.slane %v946, 2
    %v948 = vadd.f32 %v946, %v947
    %v949 = vrot.slane %v948, 1
    %v950 = vadd.f32 %v948, %v949
    %v951 = vrot.slane %v627, 4
    %v952 = vadd.f32 %v627, %v951
    %v953 = vrot.slane %v952, 2
    %v954 = vadd.f32 %v952, %v953
    %v955 = vrot.slane %v954, 1
    %v956 = vadd.f32 %v954, %v955
    %v957 = vrot.slane %v628, 4
    %v958 = vadd.f32 %v628, %v957
    %v959 = vrot.slane %v958, 2
    %v960 = vadd.f32 %v958, %v959
    %v961 = vrot.slane %v960, 1
    %v962 = vadd.f32 %v960, %v961
    %v963 = vrot.slane %v629, 4
    %v964 = vadd.f32 %v629, %v963
    %v965 = vrot.slane %v964, 2
    %v966 = vadd.f32 %v964, %v965
    %v967 = vrot.slane %v966, 1
    %v968 = vadd.f32 %v966, %v967
    %v969 = vrot.slane %v630, 4
    %v970 = vadd.f32 %v630, %v969
    %v971 = vrot.slane %v970, 2
    %v972 = vadd.f32 %v970, %v971
    %v973 = vrot.slane %v972, 1
    %v974 = vadd.f32 %v972, %v973
    %v975 = vrot.slane %v631, 4
    %v976 = vadd.f32 %v631, %v975
    %v977 = vrot.slane %v976, 2
    %v978 = vadd.f32 %v976, %v977
    %v979 = vrot.slane %v978, 1
    %v980 = vadd.f32 %v978, %v979
    %v981 = vrot.slane %v632, 4
    %v982 = vadd.f32 %v632, %v981
    %v983 = vrot.slane %v982, 2
    %v984 = vadd.f32 %v982, %v983
    %v985 = vrot.slane %v984, 1
    %v986 = vadd.f32 %v984, %v985
    %v987 = vrot.slane %v633, 4
    %v988 = vadd.f32 %v633, %v987
    %v989 = vrot.slane %v988, 2
    %v990 = vadd.f32 %v988, %v989
    %v991 = vrot.slane %v990, 1
    %v992 = vadd.f32 %v990, %v991
    %v993 = vrot.slane %v634, 4
    %v994 = vadd.f32 %v634, %v993
    %v995 = vrot.slane %v994, 2
    %v996 = vadd.f32 %v994, %v995
    %v997 = vrot.slane %v996, 1
    %v998 = vadd.f32 %v996, %v997
    %v999 = vrot.slane %v635, 4
    %v1000 = vadd.f32 %v635, %v999
    %v1001 = vrot.slane %v1000, 2
    %v1002 = vadd.f32 %v1000, %v1001
    %v1003 = vrot.slane %v1002, 1
    %v1004 = vadd.f32 %v1002, %v1003
    %v1005 = vrot.slane %v636, 4
    %v1006 = vadd.f32 %v636, %v1005
    %v1007 = vrot.slane %v1006, 2
    %v1008 = vadd.f32 %v1006, %v1007
    %v1009 = vrot.slane %v1008, 1
    %v1010 = vadd.f32 %v1008, %v1009
    %v1011 = vrot.slane %v637, 4
    %v1012 = vadd.f32 %v637, %v1011
    %v1013 = vrot.slane %v1012, 2
    %v1014 = vadd.f32 %v1012, %v1013
    %v1015 = vrot.slane %v1014, 1
    %v1016 = vadd.f32 %v1014, %v1015
    %v1017 = vrot.slane %v638, 4
    %v1018 = vadd.f32 %v638, %v1017
    %v1019 = vrot.slane %v1018, 2
    %v1020 = vadd.f32 %v1018, %v1019
    %v1021 = vrot.slane %v1020, 1
    %v1022 = vadd.f32 %v1020, %v1021
    %v1023 = vpack.c.bf16 %v644, %v644
    %v1024 = vpack.c.bf16 %v650, %v650
    %v1025 = vpack.c.bf16 %v656, %v656
    %v1026 = vpack.c.bf16 %v662, %v662
    %v1027 = vpack.c.bf16 %v668, %v668
    %v1028 = vpack.c.bf16 %v674, %v674
    %v1029 = vpack.c.bf16 %v680, %v680
    %v1030 = vpack.c.bf16 %v686, %v686
    %v1031 = vpack.c.bf16 %v692, %v692
    %v1032 = vpack.c.bf16 %v698, %v698
    %v1033 = vpack.c.bf16 %v704, %v704
    %v1034 = vpack.c.bf16 %v710, %v710
    %v1035 = vpack.c.bf16 %v716, %v716
    %v1036 = vpack.c.bf16 %v722, %v722
    %v1037 = vpack.c.bf16 %v728, %v728
    %v1038 = vpack.c.bf16 %v734, %v734
    %v1039 = vpack.c.bf16 %v740, %v740
    %v1040 = vpack.c.bf16 %v746, %v746
    %v1041 = vpack.c.bf16 %v752, %v752
    %v1042 = vpack.c.bf16 %v758, %v758
    %v1043 = vpack.c.bf16 %v764, %v764
    %v1044 = vpack.c.bf16 %v770, %v770
    %v1045 = vpack.c.bf16 %v776, %v776
    %v1046 = vpack.c.bf16 %v782, %v782
    %v1047 = vpack.c.bf16 %v788, %v788
    %v1048 = vpack.c.bf16 %v794, %v794
    %v1049 = vpack.c.bf16 %v800, %v800
    %v1050 = vpack.c.bf16 %v806, %v806
    %v1051 = vpack.c.bf16 %v812, %v812
    %v1052 = vpack.c.bf16 %v818, %v818
    %v1053 = vpack.c.bf16 %v824, %v824
    %v1054 = vpack.c.bf16 %v830, %v830
    %v1055 = vpack.c.bf16 %v836, %v836
    %v1056 = vpack.c.bf16 %v842, %v842
    %v1057 = vpack.c.bf16 %v848, %v848
    %v1058 = vpack.c.bf16 %v854, %v854
    %v1059 = vpack.c.bf16 %v860, %v860
    %v1060 = vpack.c.bf16 %v866, %v866
    %v1061 = vpack.c.bf16 %v872, %v872
    %v1062 = vpack.c.bf16 %v878, %v878
    %v1063 = vpack.c.bf16 %v884, %v884
    %v1064 = vpack.c.bf16 %v890, %v890
    %v1065 = vpack.c.bf16 %v896, %v896
    %v1066 = vpack.c.bf16 %v902, %v902
    %v1067 = vpack.c.bf16 %v908, %v908
    %v1068 = vpack.c.bf16 %v914, %v914
    %v1069 = vpack.c.bf16 %v920, %v920
    %v1070 = vpack.c.bf16 %v926, %v926
    %v1071 = vpack.c.bf16 %v932, %v932
    %v1072 = vpack.c.bf16 %v938, %v938
    %v1073 = vpack.c.bf16 %v944, %v944
    %v1074 = vpack.c.bf16 %v950, %v950
    %v1075 = vpack.c.bf16 %v956, %v956
    %v1076 = vpack.c.bf16 %v962, %v962
    %v1077 = vpack.c.bf16 %v968, %v968
    %v1078 = vpack.c.bf16 %v974, %v974
    %v1079 = vpack.c.bf16 %v980, %v980
    %v1080 = vpack.c.bf16 %v986, %v986
    %v1081 = vpack.c.bf16 %v992, %v992
    %v1082 = vpack.c.bf16 %v998, %v998
    %v1083 = vpack.c.bf16 %v1004, %v1004
    %v1084 = vpack.c.bf16 %v1010, %v1010
    %v1085 = vpack.c.bf16 %v1016, %v1016
    %v1086 = vpack.c.bf16 %v1022, %v1022
    %v1087 = vld [vmem:[%s1] sm:$0xf]
    %v1088 = vld [vmem:[%s1 + $0x4] sm:$0xf]
    %v1089 = vld [vmem:[%s1 + $0x8] sm:$0xf]
    %v1090 = vld [vmem:[%s1 + $0xc] sm:$0xf]
    %v1091 = vld [vmem:[%s1 + $0x10] sm:$0xf]
    %v1092 = vld [vmem:[%s1 + $0x14] sm:$0xf]
    %v1093 = vld [vmem:[%s1 + $0x18] sm:$0xf]
    %v1094 = vld [vmem:[%s1 + $0x1c] sm:$0xf]
    %v1095 = vld [vmem:[%s1 + $0x20] sm:$0xf]
    %v1096 = vld [vmem:[%s1 + $0x24] sm:$0xf]
    %v1097 = vld [vmem:[%s1 + $0x28] sm:$0xf]
    %v1098 = vld [vmem:[%s1 + $0x2c] sm:$0xf]
    %v1099 = vld [vmem:[%s1 + $0x30] sm:$0xf]
    %v1100 = vld [vmem:[%s1 + $0x34] sm:$0xf]
    %v1101 = vld [vmem:[%s1 + $0x38] sm:$0xf]
    %v1102 = vld [vmem:[%s1 + $0x3c] sm:$0xf]
    %v1167 = vunpack.c.l.b16 %v1023
    %v1168 = vunpack.c.l.b16 %v1024
    %v1169 = vunpack.c.l.b16 %v1025
    %v1170 = vunpack.c.l.b16 %v1026
    %v1171 = vunpack.c.l.b16 %v1027
    %v1172 = vunpack.c.l.b16 %v1028
    %v1173 = vunpack.c.l.b16 %v1029
    %v1174 = vunpack.c.l.b16 %v1030
    %v1175 = vunpack.c.l.b16 %v1031
    %v1176 = vunpack.c.l.b16 %v1032
    %v1177 = vunpack.c.l.b16 %v1033
    %v1178 = vunpack.c.l.b16 %v1034
    %v1179 = vunpack.c.l.b16 %v1035
    %v1180 = vunpack.c.l.b16 %v1036
    %v1181 = vunpack.c.l.b16 %v1037
    %v1182 = vunpack.c.l.b16 %v1038
    %v1183 = vunpack.c.l.b16 %v1039
    %v1184 = vunpack.c.l.b16 %v1040
    %v1185 = vunpack.c.l.b16 %v1041
    %v1186 = vunpack.c.l.b16 %v1042
    %v1187 = vunpack.c.l.b16 %v1043
    %v1188 = vunpack.c.l.b16 %v1044
    %v1189 = vunpack.c.l.b16 %v1045
    %v1190 = vunpack.c.l.b16 %v1046
    %v1191 = vunpack.c.l.b16 %v1047
    %v1192 = vunpack.c.l.b16 %v1048
    %v1193 = vunpack.c.l.b16 %v1049
    %v1194 = vunpack.c.l.b16 %v1050
    %v1195 = vunpack.c.l.b16 %v1051
    %v1196 = vunpack.c.l.b16 %v1052
    %v1197 = vunpack.c.l.b16 %v1053
    %v1198 = vunpack.c.l.b16 %v1054
    %v1199 = vunpack.c.l.b16 %v1055
    %v1200 = vunpack.c.l.b16 %v1056
    %v1201 = vunpack.c.l.b16 %v1057
    %v1202 = vunpack.c.l.b16 %v1058
    %v1203 = vunpack.c.l.b16 %v1059
    %v1204 = vunpack.c.l.b16 %v1060
    %v1205 = vunpack.c.l.b16 %v1061
    %v1206 = vunpack.c.l.b16 %v1062
    %v1207 = vunpack.c.l.b16 %v1063
    %v1208 = vunpack.c.l.b16 %v1064
    %v1209 = vunpack.c.l.b16 %v1065
    %v1210 = vunpack.c.l.b16 %v1066
    %v1211 = vunpack.c.l.b16 %v1067
    %v1212 = vunpack.c.l.b16 %v1068
    %v1213 = vunpack.c.l.b16 %v1069
    %v1214 = vunpack.c.l.b16 %v1070
    %v1215 = vunpack.c.l.b16 %v1071
    %v1216 = vunpack.c.l.b16 %v1072
    %v1217 = vunpack.c.l.b16 %v1073
    %v1218 = vunpack.c.l.b16 %v1074
    %v1219 = vunpack.c.l.b16 %v1075
    %v1220 = vunpack.c.l.b16 %v1076
    %v1221 = vunpack.c.l.b16 %v1077
    %v1222 = vunpack.c.l.b16 %v1078
    %v1223 = vunpack.c.l.b16 %v1079
    %v1224 = vunpack.c.l.b16 %v1080
    %v1225 = vunpack.c.l.b16 %v1081
    %v1226 = vunpack.c.l.b16 %v1082
    %v1227 = vunpack.c.l.b16 %v1083
    %v1228 = vunpack.c.l.b16 %v1084
    %v1229 = vunpack.c.l.b16 %v1085
    %v1230 = vunpack.c.l.b16 %v1086
    %vm1231 = vcmask 1041409
    %v1232 = vsel %vm1231, %v1168, %v1167
    %vm1233 = vcmask 1042434
    %v1234 = vsel %vm1233, %v1169, %v1232
    %vm1235 = vcmask 1043459
    %v1236 = vsel %vm1235, %v1170, %v1234
    %vm1237 = vcmask 1044484
    %v1238 = vsel %vm1237, %v1171, %v1236
    %vm1239 = vcmask 1045509
    %v1240 = vsel %vm1239, %v1172, %v1238
    %vm1241 = vcmask 1046534
    %v1242 = vsel %vm1241, %v1173, %v1240
    %vm1243 = vcmask 1047559
    %v1244 = vsel %vm1243, %v1174, %v1242
    %v1245 = vsel %vm1231, %v1176, %v1175
    %v1246 = vsel %vm1233, %v1177, %v1245
    %v1247 = vsel %vm1235, %v1178, %v1246
    %v1248 = vsel %vm1237, %v1179, %v1247
    %v1249 = vsel %vm1239, %v1180, %v1248
    %v1250 = vsel %vm1241, %v1181, %v1249
    %v1251 = vsel %vm1243, %v1182, %v1250
    %v1252 = vsel %vm1231, %v1184, %v1183
    %v1253 = vsel %vm1233, %v1185, %v1252
    %v1254 = vsel %vm1235, %v1186, %v1253
    %v1255 = vsel %vm1237, %v1187, %v1254
    %v1256 = vsel %vm1239, %v1188, %v1255
    %v1257 = vsel %vm1241, %v1189, %v1256
    %v1258 = vsel %vm1243, %v1190, %v1257
    %v1259 = vsel %vm1231, %v1192, %v1191
    %v1260 = vsel %vm1233, %v1193, %v1259
    %v1261 = vsel %vm1235, %v1194, %v1260
    %v1262 = vsel %vm1237, %v1195, %v1261
    %v1263 = vsel %vm1239, %v1196, %v1262
    %v1264 = vsel %vm1241, %v1197, %v1263
    %v1265 = vsel %vm1243, %v1198, %v1264
    %v1266 = vsel %vm1231, %v1200, %v1199
    %v1267 = vsel %vm1233, %v1201, %v1266
    %v1268 = vsel %vm1235, %v1202, %v1267
    %v1269 = vsel %vm1237, %v1203, %v1268
    %v1270 = vsel %vm1239, %v1204, %v1269
    %v1271 = vsel %vm1241, %v1205, %v1270
    %v1272 = vsel %vm1243, %v1206, %v1271
    %v1273 = vsel %vm1231, %v1208, %v1207
    %v1274 = vsel %vm1233, %v1209, %v1273
    %v1275 = vsel %vm1235, %v1210, %v1274
    %v1276 = vsel %vm1237, %v1211, %v1275
    %v1277 = vsel %vm1239, %v1212, %v1276
    %v1278 = vsel %vm1241, %v1213, %v1277
    %v1279 = vsel %vm1243, %v1214, %v1278
    %v1280 = vsel %vm1231, %v1216, %v1215
    %v1281 = vsel %vm1233, %v1217, %v1280
    %v1282 = vsel %vm1235, %v1218, %v1281
    %v1283 = vsel %vm1237, %v1219, %v1282
    %v1284 = vsel %vm1239, %v1220, %v1283
    %v1285 = vsel %vm1241, %v1221, %v1284
    %v1286 = vsel %vm1243, %v1222, %v1285
    %v1287 = vsel %vm1231, %v1224, %v1223
    %v1288 = vsel %vm1233, %v1225, %v1287
    %v1289 = vsel %vm1235, %v1226, %v1288
    %v1290 = vsel %vm1237, %v1227, %v1289
    %v1291 = vsel %vm1239, %v1228, %v1290
    %v1292 = vsel %vm1241, %v1229, %v1291
    %v1293 = vsel %vm1243, %v1230, %v1292
    %v1294 = vpack.c.b16 %v1251, %v1244
    %v1295 = vpack.c.b16 %v1265, %v1258
    %v1296 = vpack.c.b16 %v1279, %v1272
    %v1297 = vpack.c.b16 %v1293, %v1286
    %v1318 = vunpack.c.l.b16 %v1087
    %v1319 = vunpack.c.l.b16 %v1088
    %v1320 = vunpack.c.l.b16 %v1089
    %v1321 = vunpack.c.l.b16 %v1090
    %v1322 = vunpack.c.l.b16 %v1091
    %v1323 = vunpack.c.l.b16 %v1092
    %v1324 = vunpack.c.l.b16 %v1093
    %v1325 = vunpack.c.l.b16 %v1094
    %v1326 = vunpack.c.l.b16 %v1095
    %v1327 = vunpack.c.l.b16 %v1096
    %v1328 = vunpack.c.l.b16 %v1097
    %v1329 = vunpack.c.l.b16 %v1098
    %v1330 = vunpack.c.l.b16 %v1099
    %v1331 = vunpack.c.l.b16 %v1100
    %v1332 = vunpack.c.l.b16 %v1101
    %v1333 = vunpack.c.l.b16 %v1102
    %v1334 = vpack.c.b16 %v1319, %v1318
    %v1335 = vpack.c.b16 %v1321, %v1320
    %v1336 = vpack.c.b16 %v1323, %v1322
    %v1337 = vpack.c.b16 %v1325, %v1324
    %v1338 = vpack.c.b16 %v1327, %v1326
    %v1339 = vpack.c.b16 %v1329, %v1328
    %v1340 = vpack.c.b16 %v1331, %v1330
    %v1341 = vpack.c.b16 %v1333, %v1332
    %1350 = vmatprep.subr.bf16.mxu0 0
    %1351 = vmatpush1.bf16.msra.mxu0 %v1341
    %1352 = vmatprep.subr.bf16.mxu0 0
    %1353 = vmatpush1.bf16.msra.mxu0 %v1340
    %1354 = vmatprep.subr.bf16.mxu0 0
    %1355 = vmatpush1.bf16.msra.mxu0 %v1339
    %1356 = vmatprep.subr.bf16.mxu0 0
    %1357 = vmatpush1.bf16.msra.mxu0 %v1338
    %1358 = vmatprep.subr.bf16.mxu0 0
    %1359 = vmatpush1.bf16.msra.mxu0 %v1337
    %1360 = vmatprep.subr.bf16.mxu0 0
    %1361 = vmatpush1.bf16.msra.mxu0 %v1336
    %1362 = vmatprep.subr.bf16.mxu0 0
    %1363 = vmatpush1.bf16.msra.mxu0 %v1335
    %1364 = vmatprep.subr.bf16.mxu0 0
    %1365 = vmatpush1.bf16.msra.mxu0 %v1334
    %1366 = vmatprep.subr.bf16.mxu0 0
    %1367 = vmatpush2.bf16.msra.mxu0 0
    %1368 = vmatprep.subr.bf16.mxu0 0
    %1369 = vmatpush2.bf16.msra.mxu0 0
    %1370 = vmatprep.subr.bf16.mxu0 0
    %1371 = vmatpush2.bf16.msra.mxu0 0
    %1372 = vmatprep.subr.bf16.mxu0 0
    %1373 = vmatpush2.bf16.msra.mxu0 0
    %1374 = vmatprep.subr.bf16.mxu0 0
    %1375 = vmatpush2.bf16.msra.mxu0 0
    %1376 = vmatprep.subr.bf16.mxu0 0
    %1377 = vmatpush2.bf16.msra.mxu0 0
    %1378 = vmatprep.subr.bf16.mxu0 0
    %1379 = vmatpush2.bf16.msra.mxu0 0
    %1380 = vmatprep.subr.bf16.mxu0 0
    %1381 = vmatpush2.bf16.msra.mxu0 0
    %1382 = vmatprep.mubr.bf16.mxu0 0
    %1383 = vmatmul.mubr.bf16.gmra.mxu0 %v1294
    %v1384 = vpop.f32.mrf.mxu0
    %v1385 = vadd.f32 0.0, %v1384
    %v1386 = vpop.f32.mrf.mxu0
    %v1387 = vpop.f32.mrf.mxu0
    %v1388 = vadd.f32 0.0, %v1387
    %v1389 = vpop.f32.mrf.mxu0
    %1390 = vmatprep.mubr.bf16.mxu0 0
    %1391 = vmatmul.mubr.bf16.gmra.mxu0 %v1295
    %v1392 = vpop.f32.mrf.mxu0
    %v1393 = vadd.f32 0.0, %v1392
    %v1394 = vpop.f32.mrf.mxu0
    %v1395 = vpop.f32.mrf.mxu0
    %v1396 = vadd.f32 0.0, %v1395
    %v1397 = vpop.f32.mrf.mxu0
    %1398 = vmatprep.mubr.bf16.mxu0 0
    %1399 = vmatmul.mubr.bf16.gmra.mxu0 %v1296
    %v1400 = vpop.f32.mrf.mxu0
    %v1401 = vadd.f32 0.0, %v1400
    %v1402 = vpop.f32.mrf.mxu0
    %v1403 = vpop.f32.mrf.mxu0
    %v1404 = vadd.f32 0.0, %v1403
    %v1405 = vpop.f32.mrf.mxu0
    %1406 = vmatprep.mubr.bf16.mxu0 0
    %1407 = vmatmul.mubr.bf16.gmra.mxu0 %v1297
    %v1408 = vpop.f32.mrf.mxu0
    %v1409 = vadd.f32 0.0, %v1408
    %v1410 = vpop.f32.mrf.mxu0
    %v1411 = vpop.f32.mrf.mxu0
    %v1412 = vadd.f32 0.0, %v1411
    %v1413 = vpop.f32.mrf.mxu0
    %1414 = vdwg.mxu0
    %v1415 = vpack.c.bf16 %v1388, %v1385
    %v1416 = vpack.c.bf16 %v1396, %v1393
    %v1417 = vpack.c.bf16 %v1404, %v1401
    %v1418 = vpack.c.bf16 %v1412, %v1409
    %v1419 = vld [vmem:[#allocation2] sm:$0xf]
    %v1420 = vld [vmem:[#allocation2 + $0x4] sm:$0xf]
    %v1421 = vld [vmem:[#allocation2 + $0x8] sm:$0xf]
    %v1422 = vld [vmem:[#allocation2 + $0xc] sm:$0xf]
    %v1423 = vld [vmem:[#allocation2 + $0x10] sm:$0xf]
    %v1424 = vld [vmem:[#allocation2 + $0x14] sm:$0xf]
    %v1425 = vld [vmem:[#allocation2 + $0x18] sm:$0xf]
    %v1426 = vld [vmem:[#allocation2 + $0x1c] sm:$0xf]
    %v1427 = vld [vmem:[#allocation2 + $0x20] sm:$0xf]
    %v1428 = vld [vmem:[#allocation2 + $0x24] sm:$0xf]
    %v1429 = vld [vmem:[#allocation2 + $0x28] sm:$0xf]
    %v1430 = vld [vmem:[#allocation2 + $0x2c] sm:$0xf]
    %v1431 = vld [vmem:[#allocation2 + $0x30] sm:$0xf]
    %v1432 = vld [vmem:[#allocation2 + $0x34] sm:$0xf]
    %v1433 = vld [vmem:[#allocation2 + $0x38] sm:$0xf]
    %v1434 = vld [vmem:[#allocation2 + $0x3c] sm:$0xf]
    %v1435 = vld [vmem:[%s3] sm:$0x1]
    %v1437 = vlaneseq
    %v1438 = vshrl.u32 %v1437, 7
    %v1439 = vsub.s32 0, %v1438
    %v1440 = vrot.slane %v1435, %v1439
    %v1458 = vunpack.c.l.b16 %v1419
    %v1459 = vunpack.c.l.b16 %v1420
    %v1460 = vunpack.c.l.b16 %v1421
    %v1461 = vunpack.c.l.b16 %v1422
    %v1462 = vunpack.c.l.b16 %v1423
    %v1463 = vunpack.c.l.b16 %v1424
    %v1464 = vunpack.c.l.b16 %v1425
    %v1465 = vunpack.c.l.b16 %v1426
    %v1466 = vunpack.c.l.b16 %v1427
    %v1467 = vunpack.c.l.b16 %v1428
    %v1468 = vunpack.c.l.b16 %v1429
    %v1469 = vunpack.c.l.b16 %v1430
    %v1470 = vunpack.c.l.b16 %v1431
    %v1471 = vunpack.c.l.b16 %v1432
    %v1472 = vunpack.c.l.b16 %v1433
    %v1473 = vunpack.c.l.b16 %v1434
    %v1474 = vpack.c.b16 %v1459, %v1458
    %v1475 = vpack.c.b16 %v1461, %v1460
    %v1476 = vpack.c.b16 %v1463, %v1462
    %v1477 = vpack.c.b16 %v1465, %v1464
    %v1478 = vpack.c.b16 %v1467, %v1466
    %v1479 = vpack.c.b16 %v1469, %v1468
    %v1480 = vpack.c.b16 %v1471, %v1470
    %v1481 = vpack.c.b16 %v1473, %v1472
    %1490 = vmatprep.subr.bf16.mxu0 0
    %1491 = vmatpush1.bf16.msra.mxu0 %v1481
    %1492 = vmatprep.subr.bf16.mxu0 0
    %1493 = vmatpush1.bf16.msra.mxu0 %v1480
    %1494 = vmatprep.subr.bf16.mxu0 0
    %1495 = vmatpush1.bf16.msra.mxu0 %v1479
    %1496 = vmatprep.subr.bf16.mxu0 0
    %1497 = vmatpush1.bf16.msra.mxu0 %v1478
    %1498 = vmatprep.subr.bf16.mxu0 0
    %1499 = vmatpush1.bf16.msra.mxu0 %v1477
    %1500 = vmatprep.subr.bf16.mxu0 0
    %1501 = vmatpush1.bf16.msra.mxu0 %v1476
    %1502 = vmatprep.subr.bf16.mxu0 0
    %1503 = vmatpush1.bf16.msra.mxu0 %v1475
    %1504 = vmatprep.subr.bf16.mxu0 0
    %1505 = vmatpush1.bf16.msra.mxu0 %v1474
    %1506 = vmatprep.subr.bf16.mxu0 0
    %1507 = vmatpush2.bf16.msra.mxu0 0
    %1508 = vmatprep.subr.bf16.mxu0 0
    %1509 = vmatpush2.bf16.msra.mxu0 0
    %1510 = vmatprep.subr.bf16.mxu0 0
    %1511 = vmatpush2.bf16.msra.mxu0 0
    %1512 = vmatprep.subr.bf16.mxu0 0
    %1513 = vmatpush2.bf16.msra.mxu0 0
    %1514 = vmatprep.subr.bf16.mxu0 0
    %1515 = vmatpush2.bf16.msra.mxu0 0
    %1516 = vmatprep.subr.bf16.mxu0 0
    %1517 = vmatpush2.bf16.msra.mxu0 0
    %1518 = vmatprep.subr.bf16.mxu0 0
    %1519 = vmatpush2.bf16.msra.mxu0 0
    %1520 = vmatprep.subr.bf16.mxu0 0
    %1521 = vmatpush2.bf16.msra.mxu0 0
    %1522 = vmatprep.mubr.bf16.mxu0 0
    %1523 = vmatmul.mubr.bf16.gmra.mxu0 %v1415
    %v1524 = vpop.f32.mrf.mxu0
    %v1525 = vadd.f32 %v1440, %v1524
    %v1526 = vpop.f32.mrf.mxu0
    %v1527 = vpop.f32.mrf.mxu0
    %v1528 = vadd.f32 %v1440, %v1527
    %v1529 = vpop.f32.mrf.mxu0
    %1530 = vmatprep.mubr.bf16.mxu0 0
    %1531 = vmatmul.mubr.bf16.gmra.mxu0 %v1416
    %v1532 = vpop.f32.mrf.mxu0
    %v1533 = vadd.f32 %v1440, %v1532
    %v1534 = vpop.f32.mrf.mxu0
    %v1535 = vpop.f32.mrf.mxu0
    %v1536 = vadd.f32 %v1440, %v1535
    %v1537 = vpop.f32.mrf.mxu0
    %1538 = vmatprep.mubr.bf16.mxu0 0
    %1539 = vmatmul.mubr.bf16.gmra.mxu0 %v1417
    %v1540 = vpop.f32.mrf.mxu0
    %v1541 = vadd.f32 %v1440, %v1540
    %v1542 = vpop.f32.mrf.mxu0
    %v1543 = vpop.f32.mrf.mxu0
    %v1544 = vadd.f32 %v1440, %v1543
    %v1545 = vpop.f32.mrf.mxu0
    %1546 = vmatprep.mubr.bf16.mxu0 0
    %1547 = vmatmul.mubr.bf16.gmra.mxu0 %v1418
    %v1548 = vpop.f32.mrf.mxu0
    %v1549 = vadd.f32 %v1440, %v1548
    %v1550 = vpop.f32.mrf.mxu0
    %v1551 = vpop.f32.mrf.mxu0
    %v1552 = vadd.f32 %v1440, %v1551
    %v1553 = vpop.f32.mrf.mxu0
    %1554 = vdwg.mxu0
    %v1555 = vmax.f32 %v1525, 0.0
    %v1556 = vmax.f32 %v1528, 0.0
    %v1557 = vmax.f32 %v1533, 0.0
    %v1558 = vmax.f32 %v1536, 0.0
    %v1559 = vmax.f32 %v1541, 0.0
    %v1560 = vmax.f32 %v1544, 0.0
    %v1561 = vmax.f32 %v1549, 0.0
    %v1562 = vmax.f32 %v1552, 0.0
    %v1563 = vpack.c.bf16 %v1556, %v1555
    %v1564 = vpack.c.bf16 %v1558, %v1557
    %v1565 = vpack.c.bf16 %v1560, %v1559
    %v1566 = vpack.c.bf16 %v1562, %v1561
    %v1567 = vld [vmem:[#allocation5] sm:$0xf]
    %v1568 = vld [vmem:[#allocation5 + $0x4] sm:$0xf]
    %v1569 = vld [vmem:[#allocation5 + $0x8] sm:$0xf]
    %v1570 = vld [vmem:[#allocation5 + $0xc] sm:$0xf]
    %v1571 = vld [vmem:[#allocation5 + $0x10] sm:$0xf]
    %v1572 = vld [vmem:[#allocation5 + $0x14] sm:$0xf]
    %v1573 = vld [vmem:[#allocation5 + $0x18] sm:$0xf]
    %v1574 = vld [vmem:[#allocation5 + $0x1c] sm:$0xf]
    %v1575 = vld [vmem:[#allocation5 + $0x20] sm:$0xf]
    %v1576 = vld [vmem:[#allocation5 + $0x24] sm:$0xf]
    %v1577 = vld [vmem:[#allocation5 + $0x28] sm:$0xf]
    %v1578 = vld [vmem:[#allocation5 + $0x2c] sm:$0xf]
    %v1579 = vld [vmem:[#allocation5 + $0x30] sm:$0xf]
    %v1580 = vld [vmem:[#allocation5 + $0x34] sm:$0xf]
    %v1581 = vld [vmem:[#allocation5 + $0x38] sm:$0xf]
    %v1582 = vld [vmem:[#allocation5 + $0x3c] sm:$0xf]
    %v1583 = vld [vmem:[%s5] sm:$0x1]
    %v1585 = vlaneseq
    %v1586 = vshrl.u32 %v1585, 7
    %v1587 = vsub.s32 0, %v1586
    %v1588 = vrot.slane %v1583, %v1587
    %v1606 = vunpack.c.l.b16 %v1567
    %v1607 = vunpack.c.l.b16 %v1568
    %v1608 = vunpack.c.l.b16 %v1569
    %v1609 = vunpack.c.l.b16 %v1570
    %v1610 = vunpack.c.l.b16 %v1571
    %v1611 = vunpack.c.l.b16 %v1572
    %v1612 = vunpack.c.l.b16 %v1573
    %v1613 = vunpack.c.l.b16 %v1574
    %v1614 = vunpack.c.l.b16 %v1575
    %v1615 = vunpack.c.l.b16 %v1576
    %v1616 = vunpack.c.l.b16 %v1577
    %v1617 = vunpack.c.l.b16 %v1578
    %v1618 = vunpack.c.l.b16 %v1579
    %v1619 = vunpack.c.l.b16 %v1580
    %v1620 = vunpack.c.l.b16 %v1581
    %v1621 = vunpack.c.l.b16 %v1582
    %v1622 = vpack.c.b16 %v1607, %v1606
    %v1623 = vpack.c.b16 %v1609, %v1608
    %v1624 = vpack.c.b16 %v1611, %v1610
    %v1625 = vpack.c.b16 %v1613, %v1612
    %v1626 = vpack.c.b16 %v1615, %v1614
    %v1627 = vpack.c.b16 %v1617, %v1616
    %v1628 = vpack.c.b16 %v1619, %v1618
    %v1629 = vpack.c.b16 %v1621, %v1620
    %1638 = vmatprep.subr.bf16.mxu0 0
    %1639 = vmatpush1.bf16.msra.mxu0 %v1629
    %1640 = vmatprep.subr.bf16.mxu0 0
    %1641 = vmatpush1.bf16.msra.mxu0 %v1628
    %1642 = vmatprep.subr.bf16.mxu0 0
    %1643 = vmatpush1.bf16.msra.mxu0 %v1627
    %1644 = vmatprep.subr.bf16.mxu0 0
    %1645 = vmatpush1.bf16.msra.mxu0 %v1626
    %1646 = vmatprep.subr.bf16.mxu0 0
    %1647 = vmatpush1.bf16.msra.mxu0 %v1625
    %1648 = vmatprep.subr.bf16.mxu0 0
    %1649 = vmatpush1.bf16.msra.mxu0 %v1624
    %1650 = vmatprep.subr.bf16.mxu0 0
    %1651 = vmatpush1.bf16.msra.mxu0 %v1623
    %1652 = vmatprep.subr.bf16.mxu0 0
    %1653 = vmatpush1.bf16.msra.mxu0 %v1622
    %1654 = vmatprep.subr.bf16.mxu0 0
    %1655 = vmatpush2.bf16.msra.mxu0 0
    %1656 = vmatprep.subr.bf16.mxu0 0
    %1657 = vmatpush2.bf16.msra.mxu0 0
    %1658 = vmatprep.subr.bf16.mxu0 0
    %1659 = vmatpush2.bf16.msra.mxu0 0
    %1660 = vmatprep.subr.bf16.mxu0 0
    %1661 = vmatpush2.bf16.msra.mxu0 0
    %1662 = vmatprep.subr.bf16.mxu0 0
    %1663 = vmatpush2.bf16.msra.mxu0 0
    %1664 = vmatprep.subr.bf16.mxu0 0
    %1665 = vmatpush2.bf16.msra.mxu0 0
    %1666 = vmatprep.subr.bf16.mxu0 0
    %1667 = vmatpush2.bf16.msra.mxu0 0
    %1668 = vmatprep.subr.bf16.mxu0 0
    %1669 = vmatpush2.bf16.msra.mxu0 0
    %1670 = vmatprep.mubr.bf16.mxu0 0
    %1671 = vmatmul.mubr.bf16.gmra.mxu0 %v1563
    %v1672 = vpop.f32.mrf.mxu0
    %v1673 = vadd.f32 %v1588, %v1672
    %v1674 = vpop.f32.mrf.mxu0
    %v1675 = vpop.f32.mrf.mxu0
    %v1676 = vadd.f32 %v1588, %v1675
    %v1677 = vpop.f32.mrf.mxu0
    %1678 = vmatprep.mubr.bf16.mxu0 0
    %1679 = vmatmul.mubr.bf16.gmra.mxu0 %v1564
    %v1680 = vpop.f32.mrf.mxu0
    %v1681 = vadd.f32 %v1588, %v1680
    %v1682 = vpop.f32.mrf.mxu0
    %v1683 = vpop.f32.mrf.mxu0
    %v1684 = vadd.f32 %v1588, %v1683
    %v1685 = vpop.f32.mrf.mxu0
    %1686 = vmatprep.mubr.bf16.mxu0 0
    %1687 = vmatmul.mubr.bf16.gmra.mxu0 %v1565
    %v1688 = vpop.f32.mrf.mxu0
    %v1689 = vadd.f32 %v1588, %v1688
    %v1690 = vpop.f32.mrf.mxu0
    %v1691 = vpop.f32.mrf.mxu0
    %v1692 = vadd.f32 %v1588, %v1691
    %v1693 = vpop.f32.mrf.mxu0
    %1694 = vmatprep.mubr.bf16.mxu0 0
    %1695 = vmatmul.mubr.bf16.gmra.mxu0 %v1566
    %v1696 = vpop.f32.mrf.mxu0
    %v1697 = vadd.f32 %v1588, %v1696
    %v1698 = vpop.f32.mrf.mxu0
    %v1699 = vpop.f32.mrf.mxu0
    %v1700 = vadd.f32 %v1588, %v1699
    %v1701 = vpop.f32.mrf.mxu0
    %1702 = vdwg.mxu0
    %vm1703 = vcmp.lt.s32.totalorder %v62, 16
    %v1704 = vsel %vm1703, %v1673, -1e+30
    %v1705 = vsel %vm1703, %v1676, -1e+30
    %v1706 = vsel %vm1703, %v1681, -1e+30
    %v1707 = vsel %vm1703, %v1684, -1e+30
    %v1708 = vsel %vm1703, %v1689, -1e+30
    %v1709 = vsel %vm1703, %v1692, -1e+30
    %v1710 = vsel %vm1703, %v1697, -1e+30
    %v1711 = vsel %vm1703, %v1700, -1e+30
    %1712 = vmax.xlane.f32.xlu0 %v1704
    %v1713 = vpop.xlane.xlu0 %1712
    %1714 = vmax.xlane.f32.xlu0 %v1705
    %v1715 = vpop.xlane.xlu0 %1714
    %1716 = vmax.xlane.f32.xlu0 %v1706
    %v1717 = vpop.xlane.xlu0 %1716
    %1718 = vmax.xlane.f32.xlu0 %v1707
    %v1719 = vpop.xlane.xlu0 %1718
    %1720 = vmax.xlane.f32.xlu0 %v1708
    %v1721 = vpop.xlane.xlu0 %1720
    %1722 = vmax.xlane.f32.xlu0 %v1709
    %v1723 = vpop.xlane.xlu0 %1722
    %1724 = vmax.xlane.f32.xlu0 %v1710
    %v1725 = vpop.xlane.xlu0 %1724
    %1726 = vmax.xlane.f32.xlu0 %v1711
    %v1727 = vpop.xlane.xlu0 %1726
    %v1728 = vsub.f32 %v1704, %v1713
    %v1729 = vsub.f32 %v1705, %v1715
    %v1730 = vsub.f32 %v1706, %v1717
    %v1731 = vsub.f32 %v1707, %v1719
    %v1732 = vsub.f32 %v1708, %v1721
    %v1733 = vsub.f32 %v1709, %v1723
    %v1734 = vsub.f32 %v1710, %v1725
    %v1735 = vsub.f32 %v1711, %v1727
    %v1736 = vmul.f32 %v1728, 1.442695
    %v1737 = vpow.pop %v1736
    %v1738 = vmul.f32 %v1729, 1.442695
    %v1739 = vpow.pop %v1738
    %v1740 = vmul.f32 %v1730, 1.442695
    %v1741 = vpow.pop %v1740
    %v1742 = vmul.f32 %v1731, 1.442695
    %v1743 = vpow.pop %v1742
    %v1744 = vmul.f32 %v1732, 1.442695
    %v1745 = vpow.pop %v1744
    %v1746 = vmul.f32 %v1733, 1.442695
    %v1747 = vpow.pop %v1746
    %v1748 = vmul.f32 %v1734, 1.442695
    %v1749 = vpow.pop %v1748
    %v1750 = vmul.f32 %v1735, 1.442695
    %v1751 = vpow.pop %v1750
    %1752 = vadd.xlane.f32.xlu0 %v1737
    %v1753 = vpop.xlane.xlu0 %1752
    %1754 = vadd.xlane.f32.xlu0 %v1739
    %v1755 = vpop.xlane.xlu0 %1754
    %1756 = vadd.xlane.f32.xlu0 %v1741
    %v1757 = vpop.xlane.xlu0 %1756
    %1758 = vadd.xlane.f32.xlu0 %v1743
    %v1759 = vpop.xlane.xlu0 %1758
    %1760 = vadd.xlane.f32.xlu0 %v1745
    %v1761 = vpop.xlane.xlu0 %1760
    %1762 = vadd.xlane.f32.xlu0 %v1747
    %v1763 = vpop.xlane.xlu0 %1762
    %1764 = vadd.xlane.f32.xlu0 %v1749
    %v1765 = vpop.xlane.xlu0 %1764
    %1766 = vadd.xlane.f32.xlu0 %v1751
    %v1767 = vpop.xlane.xlu0 %1766
    %v1768 = vlog2.pop %v1753
    %v1769 = vmul.f32 %v1768, 0.6931472
    %v1770 = vlog2.pop %v1755
    %v1771 = vmul.f32 %v1770, 0.6931472
    %v1772 = vlog2.pop %v1757
    %v1773 = vmul.f32 %v1772, 0.6931472
    %v1774 = vlog2.pop %v1759
    %v1775 = vmul.f32 %v1774, 0.6931472
    %v1776 = vlog2.pop %v1761
    %v1777 = vmul.f32 %v1776, 0.6931472
    %v1778 = vlog2.pop %v1763
    %v1779 = vmul.f32 %v1778, 0.6931472
    %v1780 = vlog2.pop %v1765
    %v1781 = vmul.f32 %v1780, 0.6931472
    %v1782 = vlog2.pop %v1767
    %v1783 = vmul.f32 %v1782, 0.6931472
    %v1784 = vsub.f32 %v1728, %v1769
    %v1785 = vsub.f32 %v1729, %v1771
    %v1786 = vsub.f32 %v1730, %v1773
    %v1787 = vsub.f32 %v1731, %v1775
    %v1788 = vsub.f32 %v1732, %v1777
    %v1789 = vsub.f32 %v1733, %v1779
    %v1790 = vsub.f32 %v1734, %v1781
    %v1791 = vsub.f32 %v1735, %v1783
    %1792 = vst [vmem:[#allocation7] sm:$0xff] %v1784
    %1793 = vst [vmem:[#allocation7 + $0x8] sm:$0xff] %v1785
    %1794 = vst [vmem:[#allocation7 + $0x10] sm:$0xff] %v1786
    %1795 = vst [vmem:[#allocation7 + $0x18] sm:$0xff] %v1787
    %1796 = vst [vmem:[#allocation7 + $0x20] sm:$0xff] %v1788
    %1797 = vst [vmem:[#allocation7 + $0x28] sm:$0xff] %v1789
    %1798 = vst [vmem:[#allocation7 + $0x30] sm:$0xff] %v1790
    %1799 = vst [vmem:[#allocation7 + $0x38] sm:$0xff] %v1791
    // Predicated region
    $region34: #{tpu_custom_call.1} parent=1 // pred_check
      _
    $region35: #{tpu_custom_call.1} parent=1 // pred_check_branch
      %1801 = sbr.rel (0) target = $region37
    $region36: #{tpu_custom_call.1} parent=1 // pred_region
      %s1803 = ssub.s32 1024, 1024
      %1804 = vsyncadd [#allocation4], %s1803
      %s1805 = sshll.u32 [#allocation7], 4
      %s1806 = int_to_ptr.vmem [resolvable:$true] %s1805
      %1811 = dma.vmem_to_hbm [thread:$0]  %s1806, 1024, %s6, [#allocation4], 128, 128, 8
    $region37: #{tpu_custom_call.1} parent=1 // pred_fallthru
      _
    // Predicated region
    $region38: #{tpu_custom_call.1} parent=1 // pred_check
      _
    $region39: #{tpu_custom_call.1} parent=1 // pred_check_branch
      %1813 = sbr.rel (0) target = $region41
    $region40: #{tpu_custom_call.1} parent=1 // pred_region
      %1814 = dma.done [#allocation4], 1024
    $region41: #{tpu_custom_call.1} parent=1 // pred_fallthru
      _
    %1815 = vsyncpa [#allocation3], 1
    %1816 = vsyncpa [#allocation6], 1
    %1817 = vsyncpa [#allocation4], 1

</llo_original>
